<compile_context>
chip_gen: v6e
topology: v6e:2x2x1
jax: 0.10.0
libtpu: 0.0.40
codegen_flags: <defaults>
</compile_context>

<pallas_src>
import functools
import numpy as np
import jax
import jax.numpy as jnp
from jax import lax
from jax.experimental import pallas as pl
from jax.experimental.pallas import tpu as pltpu


# ----------------------------- config (cfg.TRAIN defaults) -----------------------------
CFG = dict(
    RPN_NEGATIVE_OVERLAP=0.3,
    RPN_POSITIVE_OVERLAP=0.7,
    RPN_FG_FRACTION=0.5,
    RPN_BATCHSIZE=256,
    RPN_BBOX_INSIDE_WEIGHTS=(1.0, 1.0, 1.0, 1.0),
    RPN_POSITIVE_WEIGHT=-1.0,
    RPN_CLOBBER_POSITIVES=False,
)

_GT_K = 10  # packed per-gt scalar table: [x1, y1, x2, y2, area, zero_mult, ctr_x, ctr_y, w, h]


# ----------------------------- anchor generation (numpy, static setup) -----------------------------
def _whctrs(anchor):
    w = anchor[2] - anchor[0] + 1
    h = anchor[3] - anchor[1] + 1
    x_ctr = anchor[0] + 0.5 * (w - 1)
    y_ctr = anchor[1] + 0.5 * (h - 1)
    return w, h, x_ctr, y_ctr


def _mkanchors(ws, hs, x_ctr, y_ctr):
    ws = ws[:, np.newaxis]
    hs = hs[:, np.newaxis]
    return np.hstack((x_ctr - 0.5 * (ws - 1),
                      y_ctr - 0.5 * (hs - 1),
                      x_ctr + 0.5 * (ws - 1),
                      y_ctr + 0.5 * (hs - 1)))


def _ratio_enum(anchor, ratios):
    w, h, x_ctr, y_ctr = _whctrs(anchor)
    size = w * h
    size_ratios = size / ratios
    ws = np.round(np.sqrt(size_ratios))
    hs = np.round(ws * ratios)
    return _mkanchors(ws, hs, x_ctr, y_ctr)


def _scale_enum(anchor, scales):
    w, h, x_ctr, y_ctr = _whctrs(anchor)
    ws = w * scales
    hs = h * scales
    return _mkanchors(ws, hs, x_ctr, y_ctr)


def generate_anchors(base_size=16, ratios=(0.5, 1, 2), scales=2 ** np.arange(3, 6)):
    base_anchor = np.array([1, 1, base_size, base_size], dtype=np.float64) - 1
    ratio_anchors = _ratio_enum(base_anchor, np.array(ratios, dtype=np.float64))
    anchors = np.vstack([_scale_enum(ratio_anchors[i, :], np.array(scales, dtype=np.float64))
                         for i in range(ratio_anchors.shape[0])])
    return anchors.astype(np.float32)


def _round_up(x, m):
    return ((x + m - 1) // m) * m


# ----------------------------- shared IoU tile (identical op sequence in both passes) -----------------------------
def _iou_tile(ax1, ay1, ax2, ay2, a_area, a_zero, gx1, gy1, gx2, gy2, g_area, zmul):
    """IoU of a dense (TR, 128) anchor tile against one gt box (scalar SMEM values)."""
    iw = jnp.maximum(jnp.minimum(ax2, gx2) - jnp.maximum(ax1, gx1) + 1.0, 0.0)
    ih = jnp.maximum(jnp.minimum(ay2, gy2) - jnp.maximum(ay1, gy1) + 1.0, 0.0)
    inter = iw * ih
    ua = a_area + g_area - inter
    ov = (inter / ua) * zmul                  # exact f32 division; zmul==0 zeroes padded gt boxes
    ov = jnp.where(a_zero, -1.0, ov)          # bbox_overlaps_batch: zero anchors -> -1
    return ov


# ----------------------------- pass 1: per-(batch, tile, gt) partial max IoU over inside anchors -----------------------------
def _gt_max_kernel(gt_ref, anch_ref, inside_ref, gtmax_ref, *, G):
    b = pl.program_id(1)

    ax1 = anch_ref[0]
    ay1 = anch_ref[1]
    ax2 = anch_ref[2]
    ay2 = anch_ref[3]                                     # (TR, 128) each
    aw = ax2 - ax1 + 1.0
    ah = ay2 - ay1 + 1.0
    a_area = aw * ah
    a_zero = jnp.logical_and(aw == 1.0, ah == 1.0)

    # outside anchors never participate in the per-gt max
    outside_pen = jnp.where(inside_ref[...] > 0.0, 0.0, -1e30)

    lane = lax.broadcasted_iota(jnp.int32, (1, 128), 1)
    row = jnp.full((1, 128), -1e30, jnp.float32)          # per-gt partial maxima packed into lanes
    for g in range(G):                                    # G is small & static -> unrolled
        base = (b * G + g) * _GT_K
        gx1 = gt_ref[base + 0]
        gy1 = gt_ref[base + 1]
        gx2 = gt_ref[base + 2]
        gy2 = gt_ref[base + 3]
        g_area = gt_ref[base + 4]
        zmul = gt_ref[base + 5]
        ov = _iou_tile(ax1, ay1, ax2, ay2, a_area, a_zero, gx1, gy1, gx2, gy2, g_area, zmul)
        m = jnp.max(ov + outside_pen)                     # scalar tile-local max (XLU slot)
        row = jnp.where(lane == g, m, row)

    gtmax_ref[...] = row[None, None]                      # single dense (1,1,1,128) store per step


# ----------------------------- pass 2: labels + bbox regression targets -----------------------------
def _assign_kernel(gt_ref, gtmax_ref, anch_ref, inside_ref, labels_ref, targets_ref,
                   *, G, neg_ov, pos_ov):
    b = pl.program_id(1)

    ax1 = anch_ref[0]
    ay1 = anch_ref[1]
    ax2 = anch_ref[2]
    ay2 = anch_ref[3]                                     # (TR, 128) each
    aw0 = ax2 - ax1 + 1.0
    ah0 = ay2 - ay1 + 1.0
    a_area = aw0 * ah0
    a_zero = jnp.logical_and(aw0 == 1.0, ah0 == 1.0)

    # loop-carried state kept to 3 arrays (max_ov, keep, best_g)
    max_ov = jnp.full(ax1.shape, -1e30, jnp.float32)
    keep = jnp.zeros(ax1.shape, jnp.bool_)
    best_g = jnp.zeros(ax1.shape, jnp.int32)

    for g in range(G):
        base = (b * G + g) * _GT_K
        gx1 = gt_ref[base + 0]
        gy1 = gt_ref[base + 1]
        gx2 = gt_ref[base + 2]
        gy2 = gt_ref[base + 3]
        g_area = gt_ref[base + 4]
        zmul = gt_ref[base + 5]
        ov = _iou_tile(ax1, ay1, ax2, ay2, a_area, a_zero, gx1, gy1, gx2, gy2, g_area, zmul)

        gm = gtmax_ref[b * G + g]                         # per-gt max over inside anchors (SMEM scalar)
        keep = jnp.logical_or(keep, ov >= gm)

        better = ov > max_ov                              # strict ">" -> first-max tie-break
        max_ov = jnp.where(better, ov, max_ov)
        best_g = jnp.where(better, jnp.int32(g), best_g)

    # label assignment (RPN_CLOBBER_POSITIVES == False ordering)
    inside = inside_ref[...] > 0.0
    labels = jnp.full(ax1.shape, -1.0, jnp.float32)
    labels = jnp.where(max_ov < neg_ov, 0.0, labels)
    labels = jnp.where(keep, 1.0, labels)
    labels = jnp.where(max_ov >= pos_ov, 1.0, labels)
    labels = jnp.where(inside, labels, -1.0)              # _unmap fill = -1
    labels_ref[...] = labels[None]                        # dense (1, TR, 128) store

    # reconstruct the chosen gt box geometry from best_g (small unrolled select pass)
    bgcx = jnp.zeros(ax1.shape, jnp.float32)
    bgcy = jnp.zeros(ax1.shape, jnp.float32)
    bgw = jnp.ones(ax1.shape, jnp.float32)
    bgh = jnp.ones(ax1.shape, jnp.float32)
    for g in range(G):
        base = (b * G + g) * _GT_K
        sel = best_g == g
        bgcx = jnp.where(sel, gt_ref[base + 6], bgcx)
        bgcy = jnp.where(sel, gt_ref[base + 7], bgcy)
        bgw = jnp.where(sel, gt_ref[base + 8], bgw)
        bgh = jnp.where(sel, gt_ref[base + 9], bgh)

    # bbox_transform_batch (exact division)
    aw = ax2 - ax1 + 1.0
    ah = ay2 - ay1 + 1.0
    ex_cx = ax1 + 0.5 * aw
    ex_cy = ay1 + 0.5 * ah
    dx = (bgcx - ex_cx) / aw
    dy = (bgcy - ex_cy) / ah
    dw = jnp.log(bgw / aw)
    dh = jnp.log(bgh / ah)
    for i, comp in enumerate((dx, dy, dw, dh)):           # four dense, unmasked (TR,128) sub-block stores
        targets_ref[0, i, :, :] = jnp.where(inside, comp, 0.0)   # _unmap fill = 0


# ----------------------------- jitted device pipeline (kernels + glue) -----------------------------
@functools.partial(jax.jit, static_argnames=("N", "TR", "H", "W", "A"))
def _anchor_target_device(anchors_t, inside_t, gt_boxes, N, TR, H, W, A):
    B, G, _ = gt_boxes.shape
    R_pad = anchors_t.shape[1]
    num_tiles = R_pad // TR
    neg_ov = float(CFG['RPN_NEGATIVE_OVERLAP'])
    pos_ov = float(CFG['RPN_POSITIVE_OVERLAP'])

    # packed per-gt scalar table for SMEM: [x1, y1, x2, y2, area, zero_mult, ctr_x, ctr_y, w, h]
    gx1 = gt_boxes[:, :, 0]
    gy1 = gt_boxes[:, :, 1]
    gx2 = gt_boxes[:, :, 2]
    gy2 = gt_boxes[:, :, 3]
    gw = gx2 - gx1 + 1.0
    gh = gy2 - gy1 + 1.0
    g_area = gw * gh
    zmul = jnp.where(jnp.logical_and(gw == 1.0, gh == 1.0), 0.0, 1.0)   # padded (all-zero) gt boxes
    gcx = gx1 + 0.5 * gw
    gcy = gy1 + 0.5 * gh
    gt_tab = jnp.stack([gx1, gy1, gx2, gy2, g_area, zmul, gcx, gcy, gw, gh], axis=2)
    gt_tab = gt_tab.astype(jnp.float32).reshape(-1)       # (B*G*_GT_K,) 1-D -> compact SMEM

    # ---- pass 1: tile-parallel per-gt partial maxima, final max done by XLA ----
    gtmax_part = pl.pallas_call(
        functools.partial(_gt_max_kernel, G=G),
        out_shape=jax.ShapeDtypeStruct((B, num_tiles, 1, 128), jnp.float32),
        grid=(num_tiles, B),
        in_specs=[
            pl.BlockSpec(memory_space=pltpu.MemorySpace.SMEM),          # gt table
            pl.BlockSpec((4, TR, 128), lambda t, b: (0, t, 0)),         # anchors (reused across b)
            pl.BlockSpec((TR, 128), lambda t, b: (t, 0)),               # inside  (reused across b)
        ],
        out_specs=pl.BlockSpec((1, 1, 1, 128), lambda t, b: (b, t, 0, 0)),
        compiler_params=pltpu.CompilerParams(
            dimension_semantics=("parallel", "parallel")),
    )(gt_tab, anchors_t, inside_t)

    gtmax = jnp.max(gtmax_part, axis=1)[:, 0, :G]                       # (B, G)
    gtmax = jnp.where(gtmax == 0.0, 1e-5, gtmax)                        # gt_max_overlaps[gt_max==0]=1e-5
    gtmax_flat = gtmax.reshape(-1).astype(jnp.float32)                  # (B*G,) -> SMEM

    # ---- pass 2: labels + regression targets, fully parallel over (tiles, B) ----
    labels_t, targets_t = pl.pallas_call(
        functools.partial(_assign_kernel, G=G, neg_ov=neg_ov, pos_ov=pos_ov),
        out_shape=(jax.ShapeDtypeStruct((B, R_pad, 128), jnp.float32),
                   jax.ShapeDtypeStruct((B, 4, R_pad, 128), jnp.float32)),
        grid=(num_tiles, B),
        in_specs=[
            pl.BlockSpec(memory_space=pltpu.MemorySpace.SMEM),          # gt table
            pl.BlockSpec(memory_space=pltpu.MemorySpace.SMEM),          # per-gt maxima
            pl.BlockSpec((4, TR, 128), lambda t, b: (0, t, 0)),
            pl.BlockSpec((TR, 128), lambda t, b: (t, 0)),
        ],
        out_specs=(
            pl.BlockSpec((1, TR, 128), lambda t, b: (b, t, 0)),
            pl.BlockSpec((1, 4, TR, 128), lambda t, b: (b, 0, t, 0)),
        ),
        compiler_params=pltpu.CompilerParams(
            dimension_semantics=("parallel", "parallel")),
    )(gt_tab, gtmax_flat, anchors_t, inside_t)

    labels = labels_t.reshape(B, -1)[:, :N]                             # (B, N)
    bbox_targets = jnp.transpose(targets_t.reshape(B, 4, -1)[:, :, :N], (0, 2, 1))  # (B, N, 4)

    # ---- fg/bg subsampling (glue) ----
    # TODO(synk): the original uses np.random.permutation to choose which excess anchors to disable;
    # here the excess is disabled deterministically in index order.
    num_fg = int(CFG['RPN_FG_FRACTION'] * CFG['RPN_BATCHSIZE'])
    fg = labels == 1
    bg = labels == 0
    sum_fg = jnp.sum(fg.astype(jnp.int32), axis=1, keepdims=True)
    sum_bg = jnp.sum(bg.astype(jnp.int32), axis=1, keepdims=True)
    fg_rank = jnp.cumsum(fg.astype(jnp.int32), axis=1)
    labels = jnp.where(fg & (sum_fg > num_fg) & (fg_rank > num_fg), -1.0, labels)
    num_bg = CFG['RPN_BATCHSIZE'] - jnp.sum((labels == 1).astype(jnp.int32), axis=1, keepdims=True)
    bg_rank = jnp.cumsum(bg.astype(jnp.int32), axis=1)
    labels = jnp.where(bg & (sum_bg > num_bg) & (bg_rank > num_bg), -1.0, labels)

    # ---- weights (depend on post-subsampling labels) ----
    bbox_inside_weights = jnp.where(labels == 1, CFG['RPN_BBOX_INSIDE_WEIGHTS'][0], 0.0)
    # replicate original quirk: num_examples is taken from the *last* batch element
    num_examples = jnp.sum((labels[-1] >= 0).astype(jnp.float32))
    positive_weights = 1.0 / num_examples
    negative_weights = 1.0 / num_examples
    bbox_outside_weights = jnp.where(labels == 1, positive_weights,
                                     jnp.where(labels == 0, negative_weights, 0.0))

    # ---- reshape to NCHW outputs, identical to the torch module ----
    labels_out = labels.reshape(B, H, W, A).transpose(0, 3, 1, 2).reshape(B, 1, A * H, W)
    bbox_targets_out = bbox_targets.reshape(B, H, W, A * 4).transpose(0, 3, 1, 2)
    biw = jnp.broadcast_to(bbox_inside_weights[:, :, None], (B, N, 4))
    biw_out = biw.reshape(B, H, W, 4 * A).transpose(0, 3, 1, 2)
    bow = jnp.broadcast_to(bbox_outside_weights[:, :, None], (B, N, 4))
    bow_out = bow.reshape(B, H, W, 4 * A).transpose(0, 3, 1, 2)
    return labels_out, bbox_targets_out, biw_out, bow_out


# ----------------------------- module wrapper -----------------------------
class AnchorTargetLayer:
    def __init__(self, feat_stride, scales, ratios, tile_rows=32):
        self._feat_stride = feat_stride
        self._anchors = generate_anchors(scales=np.array(scales), ratios=np.array(ratios))
        self._num_anchors = self._anchors.shape[0]
        self._allowed_border = 0
        self._tile_rows = max(8, _round_up(int(tile_rows), 8))
        self._cache = {}

    def _setup(self, H, W, im_h, im_w):
        """Cached host-side setup: anchor grid, inside mask, sublane-dense device layout."""
        key = (H, W, im_h, im_w)
        hit = self._cache.get(key)
        if hit is not None:
            return hit

        A = self._num_anchors
        shift_x = np.arange(0, W) * self._feat_stride
        shift_y = np.arange(0, H) * self._feat_stride
        sx, sy = np.meshgrid(shift_x, shift_y)
        shifts = np.vstack((sx.ravel(), sy.ravel(), sx.ravel(), sy.ravel())).transpose().astype(np.float32)
        K = shifts.shape[0]
        all_anchors = (self._anchors.reshape(1, A, 4) + shifts.reshape(K, 1, 4)).reshape(K * A, 4)
        all_anchors = all_anchors.astype(np.float32)
        N = K * A

        keep = ((all_anchors[:, 0] >= -self._allowed_border) &
                (all_anchors[:, 1] >= -self._allowed_border) &
                (all_anchors[:, 2] < im_w + self._allowed_border) &
                (all_anchors[:, 3] < im_h + self._allowed_border))
        inside = keep.astype(np.float32)

        # sublane-dense (rows, 128) layout, rows tiled by TR (multiple of 8)
        R = -(-N // 128)
        TR = min(self._tile_rows, _round_up(R, 8))
        R_pad = _round_up(R, TR)
        N_pad = R_pad * 128

        anchors_pad = np.zeros((N_pad, 4), np.float32)
        anchors_pad[:N] = all_anchors
        anchors_t = jnp.asarray(np.ascontiguousarray(anchors_pad.T).reshape(4, R_pad, 128))
        inside_pad = np.zeros((N_pad,), np.float32)
        inside_pad[:N] = inside
        inside_t = jnp.asarray(inside_pad.reshape(R_pad, 128))

        entry = (anchors_t, inside_t, N, TR)
        self._cache[key] = entry
        return entry

    def __call__(self, inputs):
        rpn_cls_score, gt_boxes, im_info, num_boxes = inputs
        H, W = int(rpn_cls_score.shape[2]), int(rpn_cls_score.shape[3])
        A = self._num_anchors

        # NOTE: like the reference forward(), num_boxes is accepted but unused; padded gt rows are
        # detected via the all-zero-box convention.
        # im_info must be read on host for the inside-image mask (same as long(im_info[0][...]) in torch);
        # the dependent setup is cached so this only costs on the first call per (H, W, im_h, im_w).
        im_info_np = np.asarray(jax.device_get(im_info))
        im_h = float(im_info_np[0][0])
        im_w = float(im_info_np[0][1])

        anchors_t, inside_t, N, TR = self._setup(H, W, im_h, im_w)
        outs = _anchor_target_device(anchors_t, inside_t,
                                     jnp.asarray(gt_boxes, dtype=jnp.float32),
                                     N=N, TR=TR, H=H, W=W, A=A)
        return list(outs)


# ----------------------------- demo -----------------------------
if __name__ == "__main__":
    B, G = 2, 5
    H, W = 8, 8
    feat_stride = 16
    scales = [2, 4]
    ratios = [0.5, 1, 2]
    A = len(scales) * len(ratios)                    # 6

    key = jax.random.PRNGKey(0)
    k0, k1, k2, k3, k4 = jax.random.split(key, 5)

    rpn_cls_score = jax.random.normal(k0, (B, 2 * A, H, W), dtype=jnp.float32)

    x1 = jax.random.uniform(k1, (B, G), minval=0.0, maxval=80.0)
    y1 = jax.random.uniform(k2, (B, G), minval=0.0, maxval=80.0)
    bw = jax.random.uniform(k3, (B, G), minval=16.0, maxval=48.0)
    bh = jax.random.uniform(k4, (B, G), minval=16.0, maxval=48.0)
    x2 = jnp.clip(x1 + bw, 0.0, 127.0)
    y2 = jnp.clip(y1 + bh, 0.0, 127.0)
    cls = jnp.ones((B, G), dtype=jnp.float32)
    gt_boxes = jnp.stack([x1, y1, x2, y2, cls], axis=2)
    gt_boxes = gt_boxes.at[:, -1, :].set(0.0)        # simulate padded (empty) gt box

    im_info = jnp.array([[128.0, 128.0, 1.0]] * B, dtype=jnp.float32)
    num_boxes = jnp.array([G - 1] * B, dtype=jnp.int32)

    layer = AnchorTargetLayer(feat_stride, scales, ratios)
    outs = layer((rpn_cls_score, gt_boxes, im_info, num_boxes))
    for o in outs:
        jax.block_until_ready(o)

    assert outs[0].shape == (B, 1, A * H, W)
    assert outs[1].shape == (B, 4 * A, H, W)
    assert outs[2].shape == (B, 4 * A, H, W)
    assert outs[3].shape == (B, 4 * A, H, W)
    print("KERNEL_OK")
</pallas_src>

<mosaic_0001>
module attributes {stable_mosaic.version = 11 : i64} {
  func.func @_gt_max_kernel(%arg0: i32, %arg1: i32, %arg2: memref<100xf32, #tpu.memory_space<smem>>, %arg3: memref<4x8x128xf32, #tpu.memory_space<vmem>>, %arg4: memref<8x128xf32, #tpu.memory_space<vmem>>, %arg5: memref<1x1x1x128xf32, #tpu.memory_space<vmem>>) attributes {dimension_semantics = [#tpu.dimension_semantics<parallel>, #tpu.dimension_semantics<parallel>], iteration_bounds = array<i64: 1, 2>, scalar_prefetch = 0 : i64, scratch_operands = 0 : i64, tpu.core_type = #tpu.core_type<tc>, window_params = [{transform_indices = @transform_0, window_bounds = array<i64: 100>}, {transform_indices = @transform_1, window_bounds = array<i64: 4, 8, 128>}, {transform_indices = @transform_2, window_bounds = array<i64: 8, 128>}, {transform_indices = @transform_3, window_bounds = array<i64: 1, 1, 1, 128>}]} {
    %c0 = arith.constant 0 : index
    %c0_0 = arith.constant 0 : index
    %c0_1 = arith.constant 0 : index
    %0 = vector.load %arg3[%c0, %c0_0, %c0_1] : memref<4x8x128xf32, #tpu.memory_space<vmem>>, vector<1x8x128xf32>
    %1 = vector.shape_cast %0 : vector<1x8x128xf32> to vector<8x128xf32>
    %c1 = arith.constant 1 : index
    %c0_2 = arith.constant 0 : index
    %c0_3 = arith.constant 0 : index
    %2 = vector.load %arg3[%c1, %c0_2, %c0_3] : memref<4x8x128xf32, #tpu.memory_space<vmem>>, vector<1x8x128xf32>
    %3 = vector.shape_cast %2 : vector<1x8x128xf32> to vector<8x128xf32>
    %c2 = arith.constant 2 : index
    %c0_4 = arith.constant 0 : index
    %c0_5 = arith.constant 0 : index
    %4 = vector.load %arg3[%c2, %c0_4, %c0_5] : memref<4x8x128xf32, #tpu.memory_space<vmem>>, vector<1x8x128xf32>
    %5 = vector.shape_cast %4 : vector<1x8x128xf32> to vector<8x128xf32>
    %c3 = arith.constant 3 : index
    %c0_6 = arith.constant 0 : index
    %c0_7 = arith.constant 0 : index
    %6 = vector.load %arg3[%c3, %c0_6, %c0_7] : memref<4x8x128xf32, #tpu.memory_space<vmem>>, vector<1x8x128xf32>
    %7 = vector.shape_cast %6 : vector<1x8x128xf32> to vector<8x128xf32>
    %8 = arith.subf %5, %1 : vector<8x128xf32>
    %cst = arith.constant 1.000000e+00 : f32
    %9 = vector.broadcast %cst : f32 to vector<8x128xf32>
    %10 = arith.addf %8, %9 : vector<8x128xf32>
    %11 = arith.subf %7, %3 : vector<8x128xf32>
    %cst_8 = arith.constant 1.000000e+00 : f32
    %12 = vector.broadcast %cst_8 : f32 to vector<8x128xf32>
    %13 = arith.addf %11, %12 : vector<8x128xf32>
    %14 = arith.mulf %10, %13 : vector<8x128xf32>
    %cst_9 = arith.constant 1.000000e+00 : f32
    %15 = vector.broadcast %cst_9 : f32 to vector<8x128xf32>
    %16 = arith.cmpf oeq, %10, %15 : vector<8x128xf32>
    %cst_10 = arith.constant 1.000000e+00 : f32
    %17 = vector.broadcast %cst_10 : f32 to vector<8x128xf32>
    %18 = arith.cmpf oeq, %13, %17 : vector<8x128xf32>
    %19 = arith.andi %16, %18 : vector<8x128xi1>
    %c0_11 = arith.constant 0 : index
    %c0_12 = arith.constant 0 : index
    %20 = vector.load %arg4[%c0_11, %c0_12] : memref<8x128xf32, #tpu.memory_space<vmem>>, vector<8x128xf32>
    %cst_13 = arith.constant 0.000000e+00 : f32
    %21 = vector.broadcast %cst_13 : f32 to vector<8x128xf32>
    %22 = arith.cmpf ogt, %20, %21 : vector<8x128xf32>
    %cst_14 = arith.constant 0.000000e+00 : f32
    %cst_15 = arith.constant -1.000000e+30 : f32
    %23 = vector.broadcast %cst_14 : f32 to vector<8x128xf32>
    %24 = vector.broadcast %cst_15 : f32 to vector<8x128xf32>
    %25 = arith.select %22, %23, %24 : vector<8x128xi1>, vector<8x128xf32>
    %26 = tpu.iota {dimensions = array<i32: 1>} : vector<1x128xi32>
    %cst_16 = arith.constant -1.000000e+30 : f32
    %27 = vector.broadcast %cst_16 : f32 to vector<1x128xf32>
    %c5_i32 = arith.constant 5 : i32
    %28 = arith.muli %arg1, %c5_i32 : i32
    %c0_i32 = arith.constant 0 : i32
    %29 = arith.addi %28, %c0_i32 : i32
    %c10_i32 = arith.constant 10 : i32
    %30 = arith.muli %29, %c10_i32 : i32
    %c0_i32_17 = arith.constant 0 : i32
    %31 = arith.addi %30, %c0_i32_17 : i32
    %32 = arith.index_cast %31 : i32 to index
    %33 = memref.load %arg2[%32] : memref<100xf32, #tpu.memory_space<smem>>
    %c1_i32 = arith.constant 1 : i32
    %34 = arith.addi %30, %c1_i32 : i32
    %35 = arith.index_cast %34 : i32 to index
    %36 = memref.load %arg2[%35] : memref<100xf32, #tpu.memory_space<smem>>
    %c2_i32 = arith.constant 2 : i32
    %37 = arith.addi %30, %c2_i32 : i32
    %38 = arith.index_cast %37 : i32 to index
    %39 = memref.load %arg2[%38] : memref<100xf32, #tpu.memory_space<smem>>
    %c3_i32 = arith.constant 3 : i32
    %40 = arith.addi %30, %c3_i32 : i32
    %41 = arith.index_cast %40 : i32 to index
    %42 = memref.load %arg2[%41] : memref<100xf32, #tpu.memory_space<smem>>
    %c4_i32 = arith.constant 4 : i32
    %43 = arith.addi %30, %c4_i32 : i32
    %44 = arith.index_cast %43 : i32 to index
    %45 = memref.load %arg2[%44] : memref<100xf32, #tpu.memory_space<smem>>
    %c5_i32_18 = arith.constant 5 : i32
    %46 = arith.addi %30, %c5_i32_18 : i32
    %47 = arith.index_cast %46 : i32 to index
    %48 = memref.load %arg2[%47] : memref<100xf32, #tpu.memory_space<smem>>
    %49 = vector.broadcast %39 : f32 to vector<8x128xf32>
    %50 = arith.minimumf %5, %49 : vector<8x128xf32>
    %51 = vector.broadcast %33 : f32 to vector<8x128xf32>
    %52 = arith.maximumf %1, %51 : vector<8x128xf32>
    %53 = arith.subf %50, %52 : vector<8x128xf32>
    %cst_19 = arith.constant 1.000000e+00 : f32
    %54 = vector.broadcast %cst_19 : f32 to vector<8x128xf32>
    %55 = arith.addf %53, %54 : vector<8x128xf32>
    %cst_20 = arith.constant 0.000000e+00 : f32
    %56 = vector.broadcast %cst_20 : f32 to vector<8x128xf32>
    %57 = arith.maximumf %55, %56 : vector<8x128xf32>
    %58 = vector.broadcast %42 : f32 to vector<8x128xf32>
    %59 = arith.minimumf %7, %58 : vector<8x128xf32>
    %60 = vector.broadcast %36 : f32 to vector<8x128xf32>
    %61 = arith.maximumf %3, %60 : vector<8x128xf32>
    %62 = arith.subf %59, %61 : vector<8x128xf32>
    %cst_21 = arith.constant 1.000000e+00 : f32
    %63 = vector.broadcast %cst_21 : f32 to vector<8x128xf32>
    %64 = arith.addf %62, %63 : vector<8x128xf32>
    %cst_22 = arith.constant 0.000000e+00 : f32
    %65 = vector.broadcast %cst_22 : f32 to vector<8x128xf32>
    %66 = arith.maximumf %64, %65 : vector<8x128xf32>
    %67 = arith.mulf %57, %66 : vector<8x128xf32>
    %68 = vector.broadcast %45 : f32 to vector<8x128xf32>
    %69 = arith.addf %14, %68 : vector<8x128xf32>
    %70 = arith.subf %69, %67 : vector<8x128xf32>
    %71 = arith.divf %67, %70 : vector<8x128xf32>
    %72 = vector.broadcast %48 : f32 to vector<8x128xf32>
    %73 = arith.mulf %71, %72 : vector<8x128xf32>
    %cst_23 = arith.constant -1.000000e+00 : f32
    %74 = vector.broadcast %cst_23 : f32 to vector<8x128xf32>
    %75 = arith.select %19, %74, %73 : vector<8x128xi1>, vector<8x128xf32>
    %76 = arith.addf %75, %25 : vector<8x128xf32>
    %77 = vector.shape_cast %76 : vector<8x128xf32> to vector<1x8x128xf32>
    %cst_24 = arith.constant dense<0xFF800000> : vector<1xf32>
    %78 = vector.multi_reduction <maximumf>, %77, %cst_24 [1, 2] : vector<1x8x128xf32> to vector<1xf32>
    %79 = vector.shape_cast %78 : vector<1xf32> to vector<1x1x1xf32>
    %80 = vector.extract %79[0, 0, 0] : f32 from vector<1x1x1xf32>
    %c0_i32_25 = arith.constant 0 : i32
    %81 = vector.broadcast %c0_i32_25 : i32 to vector<1x128xi32>
    %82 = arith.cmpi eq, %26, %81 : vector<1x128xi32>
    %83 = vector.broadcast %80 : f32 to vector<1x128xf32>
    %84 = arith.select %82, %83, %27 : vector<1x128xi1>, vector<1x128xf32>
    %c5_i32_26 = arith.constant 5 : i32
    %85 = arith.muli %arg1, %c5_i32_26 : i32
    %c1_i32_27 = arith.constant 1 : i32
    %86 = arith.addi %85, %c1_i32_27 : i32
    %c10_i32_28 = arith.constant 10 : i32
    %87 = arith.muli %86, %c10_i32_28 : i32
    %c0_i32_29 = arith.constant 0 : i32
    %88 = arith.addi %87, %c0_i32_29 : i32
    %89 = arith.index_cast %88 : i32 to index
    %90 = memref.load %arg2[%89] : memref<100xf32, #tpu.memory_space<smem>>
    %c1_i32_30 = arith.constant 1 : i32
    %91 = arith.addi %87, %c1_i32_30 : i32
    %92 = arith.index_cast %91 : i32 to index
    %93 = memref.load %arg2[%92] : memref<100xf32, #tpu.memory_space<smem>>
    %c2_i32_31 = arith.constant 2 : i32
    %94 = arith.addi %87, %c2_i32_31 : i32
    %95 = arith.index_cast %94 : i32 to index
    %96 = memref.load %arg2[%95] : memref<100xf32, #tpu.memory_space<smem>>
    %c3_i32_32 = arith.constant 3 : i32
    %97 = arith.addi %87, %c3_i32_32 : i32
    %98 = arith.index_cast %97 : i32 to index
    %99 = memref.load %arg2[%98] : memref<100xf32, #tpu.memory_space<smem>>
    %c4_i32_33 = arith.constant 4 : i32
    %100 = arith.addi %87, %c4_i32_33 : i32
    %101 = arith.index_cast %100 : i32 to index
    %102 = memref.load %arg2[%101] : memref<100xf32, #tpu.memory_space<smem>>
    %c5_i32_34 = arith.constant 5 : i32
    %103 = arith.addi %87, %c5_i32_34 : i32
    %104 = arith.index_cast %103 : i32 to index
    %105 = memref.load %arg2[%104] : memref<100xf32, #tpu.memory_space<smem>>
    %106 = vector.broadcast %96 : f32 to vector<8x128xf32>
    %107 = arith.minimumf %5, %106 : vector<8x128xf32>
    %108 = vector.broadcast %90 : f32 to vector<8x128xf32>
    %109 = arith.maximumf %1, %108 : vector<8x128xf32>
    %110 = arith.subf %107, %109 : vector<8x128xf32>
    %cst_35 = arith.constant 1.000000e+00 : f32
    %111 = vector.broadcast %cst_35 : f32 to vector<8x128xf32>
    %112 = arith.addf %110, %111 : vector<8x128xf32>
    %cst_36 = arith.constant 0.000000e+00 : f32
    %113 = vector.broadcast %cst_36 : f32 to vector<8x128xf32>
    %114 = arith.maximumf %112, %113 : vector<8x128xf32>
    %115 = vector.broadcast %99 : f32 to vector<8x128xf32>
    %116 = arith.minimumf %7, %115 : vector<8x128xf32>
    %117 = vector.broadcast %93 : f32 to vector<8x128xf32>
    %118 = arith.maximumf %3, %117 : vector<8x128xf32>
    %119 = arith.subf %116, %118 : vector<8x128xf32>
    %cst_37 = arith.constant 1.000000e+00 : f32
    %120 = vector.broadcast %cst_37 : f32 to vector<8x128xf32>
    %121 = arith.addf %119, %120 : vector<8x128xf32>
    %cst_38 = arith.constant 0.000000e+00 : f32
    %122 = vector.broadcast %cst_38 : f32 to vector<8x128xf32>
    %123 = arith.maximumf %121, %122 : vector<8x128xf32>
    %124 = arith.mulf %114, %123 : vector<8x128xf32>
    %125 = vector.broadcast %102 : f32 to vector<8x128xf32>
    %126 = arith.addf %14, %125 : vector<8x128xf32>
    %127 = arith.subf %126, %124 : vector<8x128xf32>
    %128 = arith.divf %124, %127 : vector<8x128xf32>
    %129 = vector.broadcast %105 : f32 to vector<8x128xf32>
    %130 = arith.mulf %128, %129 : vector<8x128xf32>
    %cst_39 = arith.constant -1.000000e+00 : f32
    %131 = vector.broadcast %cst_39 : f32 to vector<8x128xf32>
    %132 = arith.select %19, %131, %130 : vector<8x128xi1>, vector<8x128xf32>
    %133 = arith.addf %132, %25 : vector<8x128xf32>
    %134 = vector.shape_cast %133 : vector<8x128xf32> to vector<1x8x128xf32>
    %cst_40 = arith.constant dense<0xFF800000> : vector<1xf32>
    %135 = vector.multi_reduction <maximumf>, %134, %cst_40 [1, 2] : vector<1x8x128xf32> to vector<1xf32>
    %136 = vector.shape_cast %135 : vector<1xf32> to vector<1x1x1xf32>
    %137 = vector.extract %136[0, 0, 0] : f32 from vector<1x1x1xf32>
    %c1_i32_41 = arith.constant 1 : i32
    %138 = vector.broadcast %c1_i32_41 : i32 to vector<1x128xi32>
    %139 = arith.cmpi eq, %26, %138 : vector<1x128xi32>
    %140 = vector.broadcast %137 : f32 to vector<1x128xf32>
    %141 = arith.select %139, %140, %84 : vector<1x128xi1>, vector<1x128xf32>
    %c5_i32_42 = arith.constant 5 : i32
    %142 = arith.muli %arg1, %c5_i32_42 : i32
    %c2_i32_43 = arith.constant 2 : i32
    %143 = arith.addi %142, %c2_i32_43 : i32
    %c10_i32_44 = arith.constant 10 : i32
    %144 = arith.muli %143, %c10_i32_44 : i32
    %c0_i32_45 = arith.constant 0 : i32
    %145 = arith.addi %144, %c0_i32_45 : i32
    %146 = arith.index_cast %145 : i32 to index
    %147 = memref.load %arg2[%146] : memref<100xf32, #tpu.memory_space<smem>>
    %c1_i32_46 = arith.constant 1 : i32
    %148 = arith.addi %144, %c1_i32_46 : i32
    %149 = arith.index_cast %148 : i32 to index
    %150 = memref.load %arg2[%149] : memref<100xf32, #tpu.memory_space<smem>>
    %c2_i32_47 = arith.constant 2 : i32
    %151 = arith.addi %144, %c2_i32_47 : i32
    %152 = arith.index_cast %151 : i32 to index
    %153 = memref.load %arg2[%152] : memref<100xf32, #tpu.memory_space<smem>>
    %c3_i32_48 = arith.constant 3 : i32
    %154 = arith.addi %144, %c3_i32_48 : i32
    %155 = arith.index_cast %154 : i32 to index
    %156 = memref.load %arg2[%155] : memref<100xf32, #tpu.memory_space<smem>>
    %c4_i32_49 = arith.constant 4 : i32
    %157 = arith.addi %144, %c4_i32_49 : i32
    %158 = arith.index_cast %157 : i32 to index
    %159 = memref.load %arg2[%158] : memref<100xf32, #tpu.memory_space<smem>>
    %c5_i32_50 = arith.constant 5 : i32
    %160 = arith.addi %144, %c5_i32_50 : i32
    %161 = arith.index_cast %160 : i32 to index
    %162 = memref.load %arg2[%161] : memref<100xf32, #tpu.memory_space<smem>>
    %163 = vector.broadcast %153 : f32 to vector<8x128xf32>
    %164 = arith.minimumf %5, %163 : vector<8x128xf32>
    %165 = vector.broadcast %147 : f32 to vector<8x128xf32>
    %166 = arith.maximumf %1, %165 : vector<8x128xf32>
    %167 = arith.subf %164, %166 : vector<8x128xf32>
    %cst_51 = arith.constant 1.000000e+00 : f32
    %168 = vector.broadcast %cst_51 : f32 to vector<8x128xf32>
    %169 = arith.addf %167, %168 : vector<8x128xf32>
    %cst_52 = arith.constant 0.000000e+00 : f32
    %170 = vector.broadcast %cst_52 : f32 to vector<8x128xf32>
    %171 = arith.maximumf %169, %170 : vector<8x128xf32>
    %172 = vector.broadcast %156 : f32 to vector<8x128xf32>
    %173 = arith.minimumf %7, %172 : vector<8x128xf32>
    %174 = vector.broadcast %150 : f32 to vector<8x128xf32>
    %175 = arith.maximumf %3, %174 : vector<8x128xf32>
    %176 = arith.subf %173, %175 : vector<8x128xf32>
    %cst_53 = arith.constant 1.000000e+00 : f32
    %177 = vector.broadcast %cst_53 : f32 to vector<8x128xf32>
    %178 = arith.addf %176, %177 : vector<8x128xf32>
    %cst_54 = arith.constant 0.000000e+00 : f32
    %179 = vector.broadcast %cst_54 : f32 to vector<8x128xf32>
    %180 = arith.maximumf %178, %179 : vector<8x128xf32>
    %181 = arith.mulf %171, %180 : vector<8x128xf32>
    %182 = vector.broadcast %159 : f32 to vector<8x128xf32>
    %183 = arith.addf %14, %182 : vector<8x128xf32>
    %184 = arith.subf %183, %181 : vector<8x128xf32>
    %185 = arith.divf %181, %184 : vector<8x128xf32>
    %186 = vector.broadcast %162 : f32 to vector<8x128xf32>
    %187 = arith.mulf %185, %186 : vector<8x128xf32>
    %cst_55 = arith.constant -1.000000e+00 : f32
    %188 = vector.broadcast %cst_55 : f32 to vector<8x128xf32>
    %189 = arith.select %19, %188, %187 : vector<8x128xi1>, vector<8x128xf32>
    %190 = arith.addf %189, %25 : vector<8x128xf32>
    %191 = vector.shape_cast %190 : vector<8x128xf32> to vector<1x8x128xf32>
    %cst_56 = arith.constant dense<0xFF800000> : vector<1xf32>
    %192 = vector.multi_reduction <maximumf>, %191, %cst_56 [1, 2] : vector<1x8x128xf32> to vector<1xf32>
    %193 = vector.shape_cast %192 : vector<1xf32> to vector<1x1x1xf32>
    %194 = vector.extract %193[0, 0, 0] : f32 from vector<1x1x1xf32>
    %c2_i32_57 = arith.constant 2 : i32
    %195 = vector.broadcast %c2_i32_57 : i32 to vector<1x128xi32>
    %196 = arith.cmpi eq, %26, %195 : vector<1x128xi32>
    %197 = vector.broadcast %194 : f32 to vector<1x128xf32>
    %198 = arith.select %196, %197, %141 : vector<1x128xi1>, vector<1x128xf32>
    %c5_i32_58 = arith.constant 5 : i32
    %199 = arith.muli %arg1, %c5_i32_58 : i32
    %c3_i32_59 = arith.constant 3 : i32
    %200 = arith.addi %199, %c3_i32_59 : i32
    %c10_i32_60 = arith.constant 10 : i32
    %201 = arith.muli %200, %c10_i32_60 : i32
    %c0_i32_61 = arith.constant 0 : i32
    %202 = arith.addi %201, %c0_i32_61 : i32
    %203 = arith.index_cast %202 : i32 to index
    %204 = memref.load %arg2[%203] : memref<100xf32, #tpu.memory_space<smem>>
    %c1_i32_62 = arith.constant 1 : i32
    %205 = arith.addi %201, %c1_i32_62 : i32
    %206 = arith.index_cast %205 : i32 to index
    %207 = memref.load %arg2[%206] : memref<100xf32, #tpu.memory_space<smem>>
    %c2_i32_63 = arith.constant 2 : i32
    %208 = arith.addi %201, %c2_i32_63 : i32
    %209 = arith.index_cast %208 : i32 to index
    %210 = memref.load %arg2[%209] : memref<100xf32, #tpu.memory_space<smem>>
    %c3_i32_64 = arith.constant 3 : i32
    %211 = arith.addi %201, %c3_i32_64 : i32
    %212 = arith.index_cast %211 : i32 to index
    %213 = memref.load %arg2[%212] : memref<100xf32, #tpu.memory_space<smem>>
    %c4_i32_65 = arith.constant 4 : i32
    %214 = arith.addi %201, %c4_i32_65 : i32
    %215 = arith.index_cast %214 : i32 to index
    %216 = memref.load %arg2[%215] : memref<100xf32, #tpu.memory_space<smem>>
    %c5_i32_66 = arith.constant 5 : i32
    %217 = arith.addi %201, %c5_i32_66 : i32
    %218 = arith.index_cast %217 : i32 to index
    %219 = memref.load %arg2[%218] : memref<100xf32, #tpu.memory_space<smem>>
    %220 = vector.broadcast %210 : f32 to vector<8x128xf32>
    %221 = arith.minimumf %5, %220 : vector<8x128xf32>
    %222 = vector.broadcast %204 : f32 to vector<8x128xf32>
    %223 = arith.maximumf %1, %222 : vector<8x128xf32>
    %224 = arith.subf %221, %223 : vector<8x128xf32>
    %cst_67 = arith.constant 1.000000e+00 : f32
    %225 = vector.broadcast %cst_67 : f32 to vector<8x128xf32>
    %226 = arith.addf %224, %225 : vector<8x128xf32>
    %cst_68 = arith.constant 0.000000e+00 : f32
    %227 = vector.broadcast %cst_68 : f32 to vector<8x128xf32>
    %228 = arith.maximumf %226, %227 : vector<8x128xf32>
    %229 = vector.broadcast %213 : f32 to vector<8x128xf32>
    %230 = arith.minimumf %7, %229 : vector<8x128xf32>
    %231 = vector.broadcast %207 : f32 to vector<8x128xf32>
    %232 = arith.maximumf %3, %231 : vector<8x128xf32>
    %233 = arith.subf %230, %232 : vector<8x128xf32>
    %cst_69 = arith.constant 1.000000e+00 : f32
    %234 = vector.broadcast %cst_69 : f32 to vector<8x128xf32>
    %235 = arith.addf %233, %234 : vector<8x128xf32>
    %cst_70 = arith.constant 0.000000e+00 : f32
    %236 = vector.broadcast %cst_70 : f32 to vector<8x128xf32>
    %237 = arith.maximumf %235, %236 : vector<8x128xf32>
    %238 = arith.mulf %228, %237 : vector<8x128xf32>
    %239 = vector.broadcast %216 : f32 to vector<8x128xf32>
    %240 = arith.addf %14, %239 : vector<8x128xf32>
    %241 = arith.subf %240, %238 : vector<8x128xf32>
    %242 = arith.divf %238, %241 : vector<8x128xf32>
    %243 = vector.broadcast %219 : f32 to vector<8x128xf32>
    %244 = arith.mulf %242, %243 : vector<8x128xf32>
    %cst_71 = arith.constant -1.000000e+00 : f32
    %245 = vector.broadcast %cst_71 : f32 to vector<8x128xf32>
    %246 = arith.select %19, %245, %244 : vector<8x128xi1>, vector<8x128xf32>
    %247 = arith.addf %246, %25 : vector<8x128xf32>
    %248 = vector.shape_cast %247 : vector<8x128xf32> to vector<1x8x128xf32>
    %cst_72 = arith.constant dense<0xFF800000> : vector<1xf32>
    %249 = vector.multi_reduction <maximumf>, %248, %cst_72 [1, 2] : vector<1x8x128xf32> to vector<1xf32>
    %250 = vector.shape_cast %249 : vector<1xf32> to vector<1x1x1xf32>
    %251 = vector.extract %250[0, 0, 0] : f32 from vector<1x1x1xf32>
    %c3_i32_73 = arith.constant 3 : i32
    %252 = vector.broadcast %c3_i32_73 : i32 to vector<1x128xi32>
    %253 = arith.cmpi eq, %26, %252 : vector<1x128xi32>
    %254 = vector.broadcast %251 : f32 to vector<1x128xf32>
    %255 = arith.select %253, %254, %198 : vector<1x128xi1>, vector<1x128xf32>
    %c5_i32_74 = arith.constant 5 : i32
    %256 = arith.muli %arg1, %c5_i32_74 : i32
    %c4_i32_75 = arith.constant 4 : i32
    %257 = arith.addi %256, %c4_i32_75 : i32
    %c10_i32_76 = arith.constant 10 : i32
    %258 = arith.muli %257, %c10_i32_76 : i32
    %c0_i32_77 = arith.constant 0 : i32
    %259 = arith.addi %258, %c0_i32_77 : i32
    %260 = arith.index_cast %259 : i32 to index
    %261 = memref.load %arg2[%260] : memref<100xf32, #tpu.memory_space<smem>>
    %c1_i32_78 = arith.constant 1 : i32
    %262 = arith.addi %258, %c1_i32_78 : i32
    %263 = arith.index_cast %262 : i32 to index
    %264 = memref.load %arg2[%263] : memref<100xf32, #tpu.memory_space<smem>>
    %c2_i32_79 = arith.constant 2 : i32
    %265 = arith.addi %258, %c2_i32_79 : i32
    %266 = arith.index_cast %265 : i32 to index
    %267 = memref.load %arg2[%266] : memref<100xf32, #tpu.memory_space<smem>>
    %c3_i32_80 = arith.constant 3 : i32
    %268 = arith.addi %258, %c3_i32_80 : i32
    %269 = arith.index_cast %268 : i32 to index
    %270 = memref.load %arg2[%269] : memref<100xf32, #tpu.memory_space<smem>>
    %c4_i32_81 = arith.constant 4 : i32
    %271 = arith.addi %258, %c4_i32_81 : i32
    %272 = arith.index_cast %271 : i32 to index
    %273 = memref.load %arg2[%272] : memref<100xf32, #tpu.memory_space<smem>>
    %c5_i32_82 = arith.constant 5 : i32
    %274 = arith.addi %258, %c5_i32_82 : i32
    %275 = arith.index_cast %274 : i32 to index
    %276 = memref.load %arg2[%275] : memref<100xf32, #tpu.memory_space<smem>>
    %277 = vector.broadcast %267 : f32 to vector<8x128xf32>
    %278 = arith.minimumf %5, %277 : vector<8x128xf32>
    %279 = vector.broadcast %261 : f32 to vector<8x128xf32>
    %280 = arith.maximumf %1, %279 : vector<8x128xf32>
    %281 = arith.subf %278, %280 : vector<8x128xf32>
    %cst_83 = arith.constant 1.000000e+00 : f32
    %282 = vector.broadcast %cst_83 : f32 to vector<8x128xf32>
    %283 = arith.addf %281, %282 : vector<8x128xf32>
    %cst_84 = arith.constant 0.000000e+00 : f32
    %284 = vector.broadcast %cst_84 : f32 to vector<8x128xf32>
    %285 = arith.maximumf %283, %284 : vector<8x128xf32>
    %286 = vector.broadcast %270 : f32 to vector<8x128xf32>
    %287 = arith.minimumf %7, %286 : vector<8x128xf32>
    %288 = vector.broadcast %264 : f32 to vector<8x128xf32>
    %289 = arith.maximumf %3, %288 : vector<8x128xf32>
    %290 = arith.subf %287, %289 : vector<8x128xf32>
    %cst_85 = arith.constant 1.000000e+00 : f32
    %291 = vector.broadcast %cst_85 : f32 to vector<8x128xf32>
    %292 = arith.addf %290, %291 : vector<8x128xf32>
    %cst_86 = arith.constant 0.000000e+00 : f32
    %293 = vector.broadcast %cst_86 : f32 to vector<8x128xf32>
    %294 = arith.maximumf %292, %293 : vector<8x128xf32>
    %295 = arith.mulf %285, %294 : vector<8x128xf32>
    %296 = vector.broadcast %273 : f32 to vector<8x128xf32>
    %297 = arith.addf %14, %296 : vector<8x128xf32>
    %298 = arith.subf %297, %295 : vector<8x128xf32>
    %299 = arith.divf %295, %298 : vector<8x128xf32>
    %300 = vector.broadcast %276 : f32 to vector<8x128xf32>
    %301 = arith.mulf %299, %300 : vector<8x128xf32>
    %cst_87 = arith.constant -1.000000e+00 : f32
    %302 = vector.broadcast %cst_87 : f32 to vector<8x128xf32>
    %303 = arith.select %19, %302, %301 : vector<8x128xi1>, vector<8x128xf32>
    %304 = arith.addf %303, %25 : vector<8x128xf32>
    %305 = vector.shape_cast %304 : vector<8x128xf32> to vector<1x8x128xf32>
    %cst_88 = arith.constant dense<0xFF800000> : vector<1xf32>
    %306 = vector.multi_reduction <maximumf>, %305, %cst_88 [1, 2] : vector<1x8x128xf32> to vector<1xf32>
    %307 = vector.shape_cast %306 : vector<1xf32> to vector<1x1x1xf32>
    %308 = vector.extract %307[0, 0, 0] : f32 from vector<1x1x1xf32>
    %c4_i32_89 = arith.constant 4 : i32
    %309 = vector.broadcast %c4_i32_89 : i32 to vector<1x128xi32>
    %310 = arith.cmpi eq, %26, %309 : vector<1x128xi32>
    %311 = vector.broadcast %308 : f32 to vector<1x128xf32>
    %312 = arith.select %310, %311, %255 : vector<1x128xi1>, vector<1x128xf32>
    %313 = vector.shape_cast %312 : vector<1x128xf32> to vector<1x1x1x128xf32>
    %c0_90 = arith.constant 0 : index
    %c0_91 = arith.constant 0 : index
    %c0_92 = arith.constant 0 : index
    %c0_93 = arith.constant 0 : index
    %314 = vector.load %arg5[%c0_90, %c0_91, %c0_92, %c0_93] : memref<1x1x1x128xf32, #tpu.memory_space<vmem>>, vector<1x1x1x128xf32>
    tpu.vector_store %arg5[%c0_90, %c0_91, %c0_92, %c0_93], %313 {strides = array<i32>} : memref<1x1x1x128xf32, #tpu.memory_space<vmem>>, vector<1x1x1x128xf32>,
    return
  }
  func.func @transform_0(%arg0: i32, %arg1: i32) -> i32 {
    %c0_i32 = arith.constant 0 : i32
    %c0_i32_0 = arith.constant 0 : i32
    return %c0_i32 : i32
  }
  func.func @transform_1(%arg0: i32, %arg1: i32) -> (i32, i32, i32) {
    %c0_i32 = arith.constant 0 : i32
    %c0_i32_0 = arith.constant 0 : i32
    %c0_i32_1 = arith.constant 0 : i32
    return %c0_i32, %arg0, %c0_i32_0 : i32, i32, i32
  }
  func.func @transform_2(%arg0: i32, %arg1: i32) -> (i32, i32) {
    %c0_i32 = arith.constant 0 : i32
    %c0_i32_0 = arith.constant 0 : i32
    return %arg0, %c0_i32 : i32, i32
  }
  func.func @transform_3(%arg0: i32, %arg1: i32) -> (i32, i32, i32, i32) {
    %c0_i32 = arith.constant 0 : i32
    %c0_i32_0 = arith.constant 0 : i32
    %c0_i32_1 = arith.constant 0 : i32
    return %arg1, %arg0, %c0_i32, %c0_i32_0 : i32, i32, i32, i32
  }
}

module attributes {stable_mosaic.version = 11 : i64} {
  func.func @_assign_kernel(%arg0: i32, %arg1: i32, %arg2: memref<100xf32, #tpu.memory_space<smem>>, %arg3: memref<10xf32, #tpu.memory_space<smem>>, %arg4: memref<4x8x128xf32, #tpu.memory_space<vmem>>, %arg5: memref<8x128xf32, #tpu.memory_space<vmem>>, %arg6: memref<1x8x128xf32, #tpu.memory_space<vmem>>, %arg7: memref<1x4x8x128xf32, #tpu.memory_space<vmem>>) attributes {dimension_semantics = [#tpu.dimension_semantics<parallel>, #tpu.dimension_semantics<parallel>], iteration_bounds = array<i64: 1, 2>, scalar_prefetch = 0 : i64, scratch_operands = 0 : i64, tpu.core_type = #tpu.core_type<tc>, window_params = [{transform_indices = @transform_0, window_bounds = array<i64: 100>}, {transform_indices = @transform_1, window_bounds = array<i64: 10>}, {transform_indices = @transform_2, window_bounds = array<i64: 4, 8, 128>}, {transform_indices = @transform_3, window_bounds = array<i64: 8, 128>}, {transform_indices = @transform_4, window_bounds = array<i64: 1, 8, 128>}, {transform_indices = @transform_5, window_bounds = array<i64: 1, 4, 8, 128>}]} {
    %c0 = arith.constant 0 : index
    %c0_0 = arith.constant 0 : index
    %c0_1 = arith.constant 0 : index
    %0 = vector.load %arg4[%c0, %c0_0, %c0_1] : memref<4x8x128xf32, #tpu.memory_space<vmem>>, vector<1x8x128xf32>
    %1 = vector.shape_cast %0 : vector<1x8x128xf32> to vector<8x128xf32>
    %c1 = arith.constant 1 : index
    %c0_2 = arith.constant 0 : index
    %c0_3 = arith.constant 0 : index
    %2 = vector.load %arg4[%c1, %c0_2, %c0_3] : memref<4x8x128xf32, #tpu.memory_space<vmem>>, vector<1x8x128xf32>
    %3 = vector.shape_cast %2 : vector<1x8x128xf32> to vector<8x128xf32>
    %c2 = arith.constant 2 : index
    %c0_4 = arith.constant 0 : index
    %c0_5 = arith.constant 0 : index
    %4 = vector.load %arg4[%c2, %c0_4, %c0_5] : memref<4x8x128xf32, #tpu.memory_space<vmem>>, vector<1x8x128xf32>
    %5 = vector.shape_cast %4 : vector<1x8x128xf32> to vector<8x128xf32>
    %c3 = arith.constant 3 : index
    %c0_6 = arith.constant 0 : index
    %c0_7 = arith.constant 0 : index
    %6 = vector.load %arg4[%c3, %c0_6, %c0_7] : memref<4x8x128xf32, #tpu.memory_space<vmem>>, vector<1x8x128xf32>
    %7 = vector.shape_cast %6 : vector<1x8x128xf32> to vector<8x128xf32>
    %8 = arith.subf %5, %1 : vector<8x128xf32>
    %cst = arith.constant 1.000000e+00 : f32
    %9 = vector.broadcast %cst : f32 to vector<8x128xf32>
    %10 = arith.addf %8, %9 : vector<8x128xf32>
    %11 = arith.subf %7, %3 : vector<8x128xf32>
    %cst_8 = arith.constant 1.000000e+00 : f32
    %12 = vector.broadcast %cst_8 : f32 to vector<8x128xf32>
    %13 = arith.addf %11, %12 : vector<8x128xf32>
    %14 = arith.mulf %10, %13 : vector<8x128xf32>
    %cst_9 = arith.constant 1.000000e+00 : f32
    %15 = vector.broadcast %cst_9 : f32 to vector<8x128xf32>
    %16 = arith.cmpf oeq, %10, %15 : vector<8x128xf32>
    %cst_10 = arith.constant 1.000000e+00 : f32
    %17 = vector.broadcast %cst_10 : f32 to vector<8x128xf32>
    %18 = arith.cmpf oeq, %13, %17 : vector<8x128xf32>
    %19 = arith.andi %16, %18 : vector<8x128xi1>
    %cst_11 = arith.constant -1.000000e+30 : f32
    %20 = vector.broadcast %cst_11 : f32 to vector<8x128xf32>
    %false = arith.constant false
    %21 = vector.broadcast %false : i1 to vector<8x128xi1>
    %c0_i32 = arith.constant 0 : i32
    %22 = vector.broadcast %c0_i32 : i32 to vector<8x128xi32>
    %c5_i32 = arith.constant 5 : i32
    %23 = arith.muli %arg1, %c5_i32 : i32
    %c0_i32_12 = arith.constant 0 : i32
    %24 = arith.addi %23, %c0_i32_12 : i32
    %c10_i32 = arith.constant 10 : i32
    %25 = arith.muli %24, %c10_i32 : i32
    %c0_i32_13 = arith.constant 0 : i32
    %26 = arith.addi %25, %c0_i32_13 : i32
    %27 = arith.index_cast %26 : i32 to index
    %28 = memref.load %arg2[%27] : memref<100xf32, #tpu.memory_space<smem>>
    %c1_i32 = arith.constant 1 : i32
    %29 = arith.addi %25, %c1_i32 : i32
    %30 = arith.index_cast %29 : i32 to index
    %31 = memref.load %arg2[%30] : memref<100xf32, #tpu.memory_space<smem>>
    %c2_i32 = arith.constant 2 : i32
    %32 = arith.addi %25, %c2_i32 : i32
    %33 = arith.index_cast %32 : i32 to index
    %34 = memref.load %arg2[%33] : memref<100xf32, #tpu.memory_space<smem>>
    %c3_i32 = arith.constant 3 : i32
    %35 = arith.addi %25, %c3_i32 : i32
    %36 = arith.index_cast %35 : i32 to index
    %37 = memref.load %arg2[%36] : memref<100xf32, #tpu.memory_space<smem>>
    %c4_i32 = arith.constant 4 : i32
    %38 = arith.addi %25, %c4_i32 : i32
    %39 = arith.index_cast %38 : i32 to index
    %40 = memref.load %arg2[%39] : memref<100xf32, #tpu.memory_space<smem>>
    %c5_i32_14 = arith.constant 5 : i32
    %41 = arith.addi %25, %c5_i32_14 : i32
    %42 = arith.index_cast %41 : i32 to index
    %43 = memref.load %arg2[%42] : memref<100xf32, #tpu.memory_space<smem>>
    %44 = vector.broadcast %34 : f32 to vector<8x128xf32>
    %45 = arith.minimumf %5, %44 : vector<8x128xf32>
    %46 = vector.broadcast %28 : f32 to vector<8x128xf32>
    %47 = arith.maximumf %1, %46 : vector<8x128xf32>
    %48 = arith.subf %45, %47 : vector<8x128xf32>
    %cst_15 = arith.constant 1.000000e+00 : f32
    %49 = vector.broadcast %cst_15 : f32 to vector<8x128xf32>
    %50 = arith.addf %48, %49 : vector<8x128xf32>
    %cst_16 = arith.constant 0.000000e+00 : f32
    %51 = vector.broadcast %cst_16 : f32 to vector<8x128xf32>
    %52 = arith.maximumf %50, %51 : vector<8x128xf32>
    %53 = vector.broadcast %37 : f32 to vector<8x128xf32>
    %54 = arith.minimumf %7, %53 : vector<8x128xf32>
    %55 = vector.broadcast %31 : f32 to vector<8x128xf32>
    %56 = arith.maximumf %3, %55 : vector<8x128xf32>
    %57 = arith.subf %54, %56 : vector<8x128xf32>
    %cst_17 = arith.constant 1.000000e+00 : f32
    %58 = vector.broadcast %cst_17 : f32 to vector<8x128xf32>
    %59 = arith.addf %57, %58 : vector<8x128xf32>
    %cst_18 = arith.constant 0.000000e+00 : f32
    %60 = vector.broadcast %cst_18 : f32 to vector<8x128xf32>
    %61 = arith.maximumf %59, %60 : vector<8x128xf32>
    %62 = arith.mulf %52, %61 : vector<8x128xf32>
    %63 = vector.broadcast %40 : f32 to vector<8x128xf32>
    %64 = arith.addf %14, %63 : vector<8x128xf32>
    %65 = arith.subf %64, %62 : vector<8x128xf32>
    %66 = arith.divf %62, %65 : vector<8x128xf32>
    %67 = vector.broadcast %43 : f32 to vector<8x128xf32>
    %68 = arith.mulf %66, %67 : vector<8x128xf32>
    %cst_19 = arith.constant -1.000000e+00 : f32
    %69 = vector.broadcast %cst_19 : f32 to vector<8x128xf32>
    %70 = arith.select %19, %69, %68 : vector<8x128xi1>, vector<8x128xf32>
    %c5_i32_20 = arith.constant 5 : i32
    %71 = arith.muli %arg1, %c5_i32_20 : i32
    %c0_i32_21 = arith.constant 0 : i32
    %72 = arith.addi %71, %c0_i32_21 : i32
    %73 = arith.index_cast %72 : i32 to index
    %74 = memref.load %arg3[%73] : memref<10xf32, #tpu.memory_space<smem>>
    %75 = vector.broadcast %74 : f32 to vector<8x128xf32>
    %76 = arith.cmpf oge, %70, %75 : vector<8x128xf32>
    %77 = arith.ori %21, %76 : vector<8x128xi1>
    %78 = arith.cmpf ogt, %70, %20 : vector<8x128xf32>
    %79 = arith.select %78, %70, %20 : vector<8x128xi1>, vector<8x128xf32>
    %c0_i32_22 = arith.constant 0 : i32
    %80 = vector.broadcast %c0_i32_22 : i32 to vector<8x128xi32>
    %81 = arith.select %78, %80, %22 : vector<8x128xi1>, vector<8x128xi32>
    %c5_i32_23 = arith.constant 5 : i32
    %82 = arith.muli %arg1, %c5_i32_23 : i32
    %c1_i32_24 = arith.constant 1 : i32
    %83 = arith.addi %82, %c1_i32_24 : i32
    %c10_i32_25 = arith.constant 10 : i32
    %84 = arith.muli %83, %c10_i32_25 : i32
    %c0_i32_26 = arith.constant 0 : i32
    %85 = arith.addi %84, %c0_i32_26 : i32
    %86 = arith.index_cast %85 : i32 to index
    %87 = memref.load %arg2[%86] : memref<100xf32, #tpu.memory_space<smem>>
    %c1_i32_27 = arith.constant 1 : i32
    %88 = arith.addi %84, %c1_i32_27 : i32
    %89 = arith.index_cast %88 : i32 to index
    %90 = memref.load %arg2[%89] : memref<100xf32, #tpu.memory_space<smem>>
    %c2_i32_28 = arith.constant 2 : i32
    %91 = arith.addi %84, %c2_i32_28 : i32
    %92 = arith.index_cast %91 : i32 to index
    %93 = memref.load %arg2[%92] : memref<100xf32, #tpu.memory_space<smem>>
    %c3_i32_29 = arith.constant 3 : i32
    %94 = arith.addi %84, %c3_i32_29 : i32
    %95 = arith.index_cast %94 : i32 to index
    %96 = memref.load %arg2[%95] : memref<100xf32, #tpu.memory_space<smem>>
    %c4_i32_30 = arith.constant 4 : i32
    %97 = arith.addi %84, %c4_i32_30 : i32
    %98 = arith.index_cast %97 : i32 to index
    %99 = memref.load %arg2[%98] : memref<100xf32, #tpu.memory_space<smem>>
    %c5_i32_31 = arith.constant 5 : i32
    %100 = arith.addi %84, %c5_i32_31 : i32
    %101 = arith.index_cast %100 : i32 to index
    %102 = memref.load %arg2[%101] : memref<100xf32, #tpu.memory_space<smem>>
    %103 = vector.broadcast %93 : f32 to vector<8x128xf32>
    %104 = arith.minimumf %5, %103 : vector<8x128xf32>
    %105 = vector.broadcast %87 : f32 to vector<8x128xf32>
    %106 = arith.maximumf %1, %105 : vector<8x128xf32>
    %107 = arith.subf %104, %106 : vector<8x128xf32>
    %cst_32 = arith.constant 1.000000e+00 : f32
    %108 = vector.broadcast %cst_32 : f32 to vector<8x128xf32>
    %109 = arith.addf %107, %108 : vector<8x128xf32>
    %cst_33 = arith.constant 0.000000e+00 : f32
    %110 = vector.broadcast %cst_33 : f32 to vector<8x128xf32>
    %111 = arith.maximumf %109, %110 : vector<8x128xf32>
    %112 = vector.broadcast %96 : f32 to vector<8x128xf32>
    %113 = arith.minimumf %7, %112 : vector<8x128xf32>
    %114 = vector.broadcast %90 : f32 to vector<8x128xf32>
    %115 = arith.maximumf %3, %114 : vector<8x128xf32>
    %116 = arith.subf %113, %115 : vector<8x128xf32>
    %cst_34 = arith.constant 1.000000e+00 : f32
    %117 = vector.broadcast %cst_34 : f32 to vector<8x128xf32>
    %118 = arith.addf %116, %117 : vector<8x128xf32>
    %cst_35 = arith.constant 0.000000e+00 : f32
    %119 = vector.broadcast %cst_35 : f32 to vector<8x128xf32>
    %120 = arith.maximumf %118, %119 : vector<8x128xf32>
    %121 = arith.mulf %111, %120 : vector<8x128xf32>
    %122 = vector.broadcast %99 : f32 to vector<8x128xf32>
    %123 = arith.addf %14, %122 : vector<8x128xf32>
    %124 = arith.subf %123, %121 : vector<8x128xf32>
    %125 = arith.divf %121, %124 : vector<8x128xf32>
    %126 = vector.broadcast %102 : f32 to vector<8x128xf32>
    %127 = arith.mulf %125, %126 : vector<8x128xf32>
    %cst_36 = arith.constant -1.000000e+00 : f32
    %128 = vector.broadcast %cst_36 : f32 to vector<8x128xf32>
    %129 = arith.select %19, %128, %127 : vector<8x128xi1>, vector<8x128xf32>
    %c5_i32_37 = arith.constant 5 : i32
    %130 = arith.muli %arg1, %c5_i32_37 : i32
    %c1_i32_38 = arith.constant 1 : i32
    %131 = arith.addi %130, %c1_i32_38 : i32
    %132 = arith.index_cast %131 : i32 to index
    %133 = memref.load %arg3[%132] : memref<10xf32, #tpu.memory_space<smem>>
    %134 = vector.broadcast %133 : f32 to vector<8x128xf32>
    %135 = arith.cmpf oge, %129, %134 : vector<8x128xf32>
    %136 = arith.ori %77, %135 : vector<8x128xi1>
    %137 = arith.cmpf ogt, %129, %79 : vector<8x128xf32>
    %138 = arith.select %137, %129, %79 : vector<8x128xi1>, vector<8x128xf32>
    %c1_i32_39 = arith.constant 1 : i32
    %139 = vector.broadcast %c1_i32_39 : i32 to vector<8x128xi32>
    %140 = arith.select %137, %139, %81 : vector<8x128xi1>, vector<8x128xi32>
    %c5_i32_40 = arith.constant 5 : i32
    %141 = arith.muli %arg1, %c5_i32_40 : i32
    %c2_i32_41 = arith.constant 2 : i32
    %142 = arith.addi %141, %c2_i32_41 : i32
    %c10_i32_42 = arith.constant 10 : i32
    %143 = arith.muli %142, %c10_i32_42 : i32
    %c0_i32_43 = arith.constant 0 : i32
    %144 = arith.addi %143, %c0_i32_43 : i32
    %145 = arith.index_cast %144 : i32 to index
    %146 = memref.load %arg2[%145] : memref<100xf32, #tpu.memory_space<smem>>
    %c1_i32_44 = arith.constant 1 : i32
    %147 = arith.addi %143, %c1_i32_44 : i32
    %148 = arith.index_cast %147 : i32 to index
    %149 = memref.load %arg2[%148] : memref<100xf32, #tpu.memory_space<smem>>
    %c2_i32_45 = arith.constant 2 : i32
    %150 = arith.addi %143, %c2_i32_45 : i32
    %151 = arith.index_cast %150 : i32 to index
    %152 = memref.load %arg2[%151] : memref<100xf32, #tpu.memory_space<smem>>
    %c3_i32_46 = arith.constant 3 : i32
    %153 = arith.addi %143, %c3_i32_46 : i32
    %154 = arith.index_cast %153 : i32 to index
    %155 = memref.load %arg2[%154] : memref<100xf32, #tpu.memory_space<smem>>
    %c4_i32_47 = arith.constant 4 : i32
    %156 = arith.addi %143, %c4_i32_47 : i32
    %157 = arith.index_cast %156 : i32 to index
    %158 = memref.load %arg2[%157] : memref<100xf32, #tpu.memory_space<smem>>
    %c5_i32_48 = arith.constant 5 : i32
    %159 = arith.addi %143, %c5_i32_48 : i32
    %160 = arith.index_cast %159 : i32 to index
    %161 = memref.load %arg2[%160] : memref<100xf32, #tpu.memory_space<smem>>
    %162 = vector.broadcast %152 : f32 to vector<8x128xf32>
    %163 = arith.minimumf %5, %162 : vector<8x128xf32>
    %164 = vector.broadcast %146 : f32 to vector<8x128xf32>
    %165 = arith.maximumf %1, %164 : vector<8x128xf32>
    %166 = arith.subf %163, %165 : vector<8x128xf32>
    %cst_49 = arith.constant 1.000000e+00 : f32
    %167 = vector.broadcast %cst_49 : f32 to vector<8x128xf32>
    %168 = arith.addf %166, %167 : vector<8x128xf32>
    %cst_50 = arith.constant 0.000000e+00 : f32
    %169 = vector.broadcast %cst_50 : f32 to vector<8x128xf32>
    %170 = arith.maximumf %168, %169 : vector<8x128xf32>
    %171 = vector.broadcast %155 : f32 to vector<8x128xf32>
    %172 = arith.minimumf %7, %171 : vector<8x128xf32>
    %173 = vector.broadcast %149 : f32 to vector<8x128xf32>
    %174 = arith.maximumf %3, %173 : vector<8x128xf32>
    %175 = arith.subf %172, %174 : vector<8x128xf32>
    %cst_51 = arith.constant 1.000000e+00 : f32
    %176 = vector.broadcast %cst_51 : f32 to vector<8x128xf32>
    %177 = arith.addf %175, %176 : vector<8x128xf32>
    %cst_52 = arith.constant 0.000000e+00 : f32
    %178 = vector.broadcast %cst_52 : f32 to vector<8x128xf32>
    %179 = arith.maximumf %177, %178 : vector<8x128xf32>
    %180 = arith.mulf %170, %179 : vector<8x128xf32>
    %181 = vector.broadcast %158 : f32 to vector<8x128xf32>
    %182 = arith.addf %14, %181 : vector<8x128xf32>
    %183 = arith.subf %182, %180 : vector<8x128xf32>
    %184 = arith.divf %180, %183 : vector<8x128xf32>
    %185 = vector.broadcast %161 : f32 to vector<8x128xf32>
    %186 = arith.mulf %184, %185 : vector<8x128xf32>
    %cst_53 = arith.constant -1.000000e+00 : f32
    %187 = vector.broadcast %cst_53 : f32 to vector<8x128xf32>
    %188 = arith.select %19, %187, %186 : vector<8x128xi1>, vector<8x128xf32>
    %c5_i32_54 = arith.constant 5 : i32
    %189 = arith.muli %arg1, %c5_i32_54 : i32
    %c2_i32_55 = arith.constant 2 : i32
    %190 = arith.addi %189, %c2_i32_55 : i32
    %191 = arith.index_cast %190 : i32 to index
    %192 = memref.load %arg3[%191] : memref<10xf32, #tpu.memory_space<smem>>
    %193 = vector.broadcast %192 : f32 to vector<8x128xf32>
    %194 = arith.cmpf oge, %188, %193 : vector<8x128xf32>
    %195 = arith.ori %136, %194 : vector<8x128xi1>
    %196 = arith.cmpf ogt, %188, %138 : vector<8x128xf32>
    %197 = arith.select %196, %188, %138 : vector<8x128xi1>, vector<8x128xf32>
    %c2_i32_56 = arith.constant 2 : i32
    %198 = vector.broadcast %c2_i32_56 : i32 to vector<8x128xi32>
    %199 = arith.select %196, %198, %140 : vector<8x128xi1>, vector<8x128xi32>
    %c5_i32_57 = arith.constant 5 : i32
    %200 = arith.muli %arg1, %c5_i32_57 : i32
    %c3_i32_58 = arith.constant 3 : i32
    %201 = arith.addi %200, %c3_i32_58 : i32
    %c10_i32_59 = arith.constant 10 : i32
    %202 = arith.muli %201, %c10_i32_59 : i32
    %c0_i32_60 = arith.constant 0 : i32
    %203 = arith.addi %202, %c0_i32_60 : i32
    %204 = arith.index_cast %203 : i32 to index
    %205 = memref.load %arg2[%204] : memref<100xf32, #tpu.memory_space<smem>>
    %c1_i32_61 = arith.constant 1 : i32
    %206 = arith.addi %202, %c1_i32_61 : i32
    %207 = arith.index_cast %206 : i32 to index
    %208 = memref.load %arg2[%207] : memref<100xf32, #tpu.memory_space<smem>>
    %c2_i32_62 = arith.constant 2 : i32
    %209 = arith.addi %202, %c2_i32_62 : i32
    %210 = arith.index_cast %209 : i32 to index
    %211 = memref.load %arg2[%210] : memref<100xf32, #tpu.memory_space<smem>>
    %c3_i32_63 = arith.constant 3 : i32
    %212 = arith.addi %202, %c3_i32_63 : i32
    %213 = arith.index_cast %212 : i32 to index
    %214 = memref.load %arg2[%213] : memref<100xf32, #tpu.memory_space<smem>>
    %c4_i32_64 = arith.constant 4 : i32
    %215 = arith.addi %202, %c4_i32_64 : i32
    %216 = arith.index_cast %215 : i32 to index
    %217 = memref.load %arg2[%216] : memref<100xf32, #tpu.memory_space<smem>>
    %c5_i32_65 = arith.constant 5 : i32
    %218 = arith.addi %202, %c5_i32_65 : i32
    %219 = arith.index_cast %218 : i32 to index
    %220 = memref.load %arg2[%219] : memref<100xf32, #tpu.memory_space<smem>>
    %221 = vector.broadcast %211 : f32 to vector<8x128xf32>
    %222 = arith.minimumf %5, %221 : vector<8x128xf32>
    %223 = vector.broadcast %205 : f32 to vector<8x128xf32>
    %224 = arith.maximumf %1, %223 : vector<8x128xf32>
    %225 = arith.subf %222, %224 : vector<8x128xf32>
    %cst_66 = arith.constant 1.000000e+00 : f32
    %226 = vector.broadcast %cst_66 : f32 to vector<8x128xf32>
    %227 = arith.addf %225, %226 : vector<8x128xf32>
    %cst_67 = arith.constant 0.000000e+00 : f32
    %228 = vector.broadcast %cst_67 : f32 to vector<8x128xf32>
    %229 = arith.maximumf %227, %228 : vector<8x128xf32>
    %230 = vector.broadcast %214 : f32 to vector<8x128xf32>
    %231 = arith.minimumf %7, %230 : vector<8x128xf32>
    %232 = vector.broadcast %208 : f32 to vector<8x128xf32>
    %233 = arith.maximumf %3, %232 : vector<8x128xf32>
    %234 = arith.subf %231, %233 : vector<8x128xf32>
    %cst_68 = arith.constant 1.000000e+00 : f32
    %235 = vector.broadcast %cst_68 : f32 to vector<8x128xf32>
    %236 = arith.addf %234, %235 : vector<8x128xf32>
    %cst_69 = arith.constant 0.000000e+00 : f32
    %237 = vector.broadcast %cst_69 : f32 to vector<8x128xf32>
    %238 = arith.maximumf %236, %237 : vector<8x128xf32>
    %239 = arith.mulf %229, %238 : vector<8x128xf32>
    %240 = vector.broadcast %217 : f32 to vector<8x128xf32>
    %241 = arith.addf %14, %240 : vector<8x128xf32>
    %242 = arith.subf %241, %239 : vector<8x128xf32>
    %243 = arith.divf %239, %242 : vector<8x128xf32>
    %244 = vector.broadcast %220 : f32 to vector<8x128xf32>
    %245 = arith.mulf %243, %244 : vector<8x128xf32>
    %cst_70 = arith.constant -1.000000e+00 : f32
    %246 = vector.broadcast %cst_70 : f32 to vector<8x128xf32>
    %247 = arith.select %19, %246, %245 : vector<8x128xi1>, vector<8x128xf32>
    %c5_i32_71 = arith.constant 5 : i32
    %248 = arith.muli %arg1, %c5_i32_71 : i32
    %c3_i32_72 = arith.constant 3 : i32
    %249 = arith.addi %248, %c3_i32_72 : i32
    %250 = arith.index_cast %249 : i32 to index
    %251 = memref.load %arg3[%250] : memref<10xf32, #tpu.memory_space<smem>>
    %252 = vector.broadcast %251 : f32 to vector<8x128xf32>
    %253 = arith.cmpf oge, %247, %252 : vector<8x128xf32>
    %254 = arith.ori %195, %253 : vector<8x128xi1>
    %255 = arith.cmpf ogt, %247, %197 : vector<8x128xf32>
    %256 = arith.select %255, %247, %197 : vector<8x128xi1>, vector<8x128xf32>
    %c3_i32_73 = arith.constant 3 : i32
    %257 = vector.broadcast %c3_i32_73 : i32 to vector<8x128xi32>
    %258 = arith.select %255, %257, %199 : vector<8x128xi1>, vector<8x128xi32>
    %c5_i32_74 = arith.constant 5 : i32
    %259 = arith.muli %arg1, %c5_i32_74 : i32
    %c4_i32_75 = arith.constant 4 : i32
    %260 = arith.addi %259, %c4_i32_75 : i32
    %c10_i32_76 = arith.constant 10 : i32
    %261 = arith.muli %260, %c10_i32_76 : i32
    %c0_i32_77 = arith.constant 0 : i32
    %262 = arith.addi %261, %c0_i32_77 : i32
    %263 = arith.index_cast %262 : i32 to index
    %264 = memref.load %arg2[%263] : memref<100xf32, #tpu.memory_space<smem>>
    %c1_i32_78 = arith.constant 1 : i32
    %265 = arith.addi %261, %c1_i32_78 : i32
    %266 = arith.index_cast %265 : i32 to index
    %267 = memref.load %arg2[%266] : memref<100xf32, #tpu.memory_space<smem>>
    %c2_i32_79 = arith.constant 2 : i32
    %268 = arith.addi %261, %c2_i32_79 : i32
    %269 = arith.index_cast %268 : i32 to index
    %270 = memref.load %arg2[%269] : memref<100xf32, #tpu.memory_space<smem>>
    %c3_i32_80 = arith.constant 3 : i32
    %271 = arith.addi %261, %c3_i32_80 : i32
    %272 = arith.index_cast %271 : i32 to index
    %273 = memref.load %arg2[%272] : memref<100xf32, #tpu.memory_space<smem>>
    %c4_i32_81 = arith.constant 4 : i32
    %274 = arith.addi %261, %c4_i32_81 : i32
    %275 = arith.index_cast %274 : i32 to index
    %276 = memref.load %arg2[%275] : memref<100xf32, #tpu.memory_space<smem>>
    %c5_i32_82 = arith.constant 5 : i32
    %277 = arith.addi %261, %c5_i32_82 : i32
    %278 = arith.index_cast %277 : i32 to index
    %279 = memref.load %arg2[%278] : memref<100xf32, #tpu.memory_space<smem>>
    %280 = vector.broadcast %270 : f32 to vector<8x128xf32>
    %281 = arith.minimumf %5, %280 : vector<8x128xf32>
    %282 = vector.broadcast %264 : f32 to vector<8x128xf32>
    %283 = arith.maximumf %1, %282 : vector<8x128xf32>
    %284 = arith.subf %281, %283 : vector<8x128xf32>
    %cst_83 = arith.constant 1.000000e+00 : f32
    %285 = vector.broadcast %cst_83 : f32 to vector<8x128xf32>
    %286 = arith.addf %284, %285 : vector<8x128xf32>
    %cst_84 = arith.constant 0.000000e+00 : f32
    %287 = vector.broadcast %cst_84 : f32 to vector<8x128xf32>
    %288 = arith.maximumf %286, %287 : vector<8x128xf32>
    %289 = vector.broadcast %273 : f32 to vector<8x128xf32>
    %290 = arith.minimumf %7, %289 : vector<8x128xf32>
    %291 = vector.broadcast %267 : f32 to vector<8x128xf32>
    %292 = arith.maximumf %3, %291 : vector<8x128xf32>
    %293 = arith.subf %290, %292 : vector<8x128xf32>
    %cst_85 = arith.constant 1.000000e+00 : f32
    %294 = vector.broadcast %cst_85 : f32 to vector<8x128xf32>
    %295 = arith.addf %293, %294 : vector<8x128xf32>
    %cst_86 = arith.constant 0.000000e+00 : f32
    %296 = vector.broadcast %cst_86 : f32 to vector<8x128xf32>
    %297 = arith.maximumf %295, %296 : vector<8x128xf32>
    %298 = arith.mulf %288, %297 : vector<8x128xf32>
    %299 = vector.broadcast %276 : f32 to vector<8x128xf32>
    %300 = arith.addf %14, %299 : vector<8x128xf32>
    %301 = arith.subf %300, %298 : vector<8x128xf32>
    %302 = arith.divf %298, %301 : vector<8x128xf32>
    %303 = vector.broadcast %279 : f32 to vector<8x128xf32>
    %304 = arith.mulf %302, %303 : vector<8x128xf32>
    %cst_87 = arith.constant -1.000000e+00 : f32
    %305 = vector.broadcast %cst_87 : f32 to vector<8x128xf32>
    %306 = arith.select %19, %305, %304 : vector<8x128xi1>, vector<8x128xf32>
    %c5_i32_88 = arith.constant 5 : i32
    %307 = arith.muli %arg1, %c5_i32_88 : i32
    %c4_i32_89 = arith.constant 4 : i32
    %308 = arith.addi %307, %c4_i32_89 : i32
    %309 = arith.index_cast %308 : i32 to index
    %310 = memref.load %arg3[%309] : memref<10xf32, #tpu.memory_space<smem>>
    %311 = vector.broadcast %310 : f32 to vector<8x128xf32>
    %312 = arith.cmpf oge, %306, %311 : vector<8x128xf32>
    %313 = arith.ori %254, %312 : vector<8x128xi1>
    %314 = arith.cmpf ogt, %306, %256 : vector<8x128xf32>
    %315 = arith.select %314, %306, %256 : vector<8x128xi1>, vector<8x128xf32>
    %c4_i32_90 = arith.constant 4 : i32
    %316 = vector.broadcast %c4_i32_90 : i32 to vector<8x128xi32>
    %317 = arith.select %314, %316, %258 : vector<8x128xi1>, vector<8x128xi32>
    %c0_91 = arith.constant 0 : index
    %c0_92 = arith.constant 0 : index
    %318 = vector.load %arg5[%c0_91, %c0_92] : memref<8x128xf32, #tpu.memory_space<vmem>>, vector<8x128xf32>
    %cst_93 = arith.constant 0.000000e+00 : f32
    %319 = vector.broadcast %cst_93 : f32 to vector<8x128xf32>
    %320 = arith.cmpf ogt, %318, %319 : vector<8x128xf32>
    %cst_94 = arith.constant -1.000000e+00 : f32
    %321 = vector.broadcast %cst_94 : f32 to vector<8x128xf32>
    %cst_95 = arith.constant 3.000000e-01 : f32
    %322 = vector.broadcast %cst_95 : f32 to vector<8x128xf32>
    %323 = arith.cmpf olt, %315, %322 : vector<8x128xf32>
    %cst_96 = arith.constant 0.000000e+00 : f32
    %324 = vector.broadcast %cst_96 : f32 to vector<8x128xf32>
    %325 = arith.select %323, %324, %321 : vector<8x128xi1>, vector<8x128xf32>
    %cst_97 = arith.constant 1.000000e+00 : f32
    %326 = vector.broadcast %cst_97 : f32 to vector<8x128xf32>
    %327 = arith.select %313, %326, %325 : vector<8x128xi1>, vector<8x128xf32>
    %cst_98 = arith.constant 0.699999988 : f32
    %328 = vector.broadcast %cst_98 : f32 to vector<8x128xf32>
    %329 = arith.cmpf oge, %315, %328 : vector<8x128xf32>
    %cst_99 = arith.constant 1.000000e+00 : f32
    %330 = vector.broadcast %cst_99 : f32 to vector<8x128xf32>
    %331 = arith.select %329, %330, %327 : vector<8x128xi1>, vector<8x128xf32>
    %cst_100 = arith.constant -1.000000e+00 : f32
    %332 = vector.broadcast %cst_100 : f32 to vector<8x128xf32>
    %333 = arith.select %320, %331, %332 : vector<8x128xi1>, vector<8x128xf32>
    %334 = vector.shape_cast %333 : vector<8x128xf32> to vector<1x8x128xf32>
    %c0_101 = arith.constant 0 : index
    %c0_102 = arith.constant 0 : index
    %c0_103 = arith.constant 0 : index
    %335 = vector.load %arg6[%c0_101, %c0_102, %c0_103] : memref<1x8x128xf32, #tpu.memory_space<vmem>>, vector<1x8x128xf32>
    tpu.vector_store %arg6[%c0_101, %c0_102, %c0_103], %334 {strides = array<i32>} : memref<1x8x128xf32, #tpu.memory_space<vmem>>, vector<1x8x128xf32>,
    %cst_104 = arith.constant 0.000000e+00 : f32
    %336 = vector.broadcast %cst_104 : f32 to vector<8x128xf32>
    %cst_105 = arith.constant 0.000000e+00 : f32
    %337 = vector.broadcast %cst_105 : f32 to vector<8x128xf32>
    %cst_106 = arith.constant 1.000000e+00 : f32
    %338 = vector.broadcast %cst_106 : f32 to vector<8x128xf32>
    %cst_107 = arith.constant 1.000000e+00 : f32
    %339 = vector.broadcast %cst_107 : f32 to vector<8x128xf32>
    %c5_i32_108 = arith.constant 5 : i32
    %340 = arith.muli %arg1, %c5_i32_108 : i32
    %c0_i32_109 = arith.constant 0 : i32
    %341 = arith.addi %340, %c0_i32_109 : i32
    %c10_i32_110 = arith.constant 10 : i32
    %342 = arith.muli %341, %c10_i32_110 : i32
    %c0_i32_111 = arith.constant 0 : i32
    %343 = vector.broadcast %c0_i32_111 : i32 to vector<8x128xi32>
    %344 = arith.cmpi eq, %317, %343 : vector<8x128xi32>
    %c6_i32 = arith.constant 6 : i32
    %345 = arith.addi %342, %c6_i32 : i32
    %346 = arith.index_cast %345 : i32 to index
    %347 = memref.load %arg2[%346] : memref<100xf32, #tpu.memory_space<smem>>
    %348 = vector.broadcast %347 : f32 to vector<8x128xf32>
    %349 = arith.select %344, %348, %336 : vector<8x128xi1>, vector<8x128xf32>
    %c7_i32 = arith.constant 7 : i32
    %350 = arith.addi %342, %c7_i32 : i32
    %351 = arith.index_cast %350 : i32 to index
    %352 = memref.load %arg2[%351] : memref<100xf32, #tpu.memory_space<smem>>
    %353 = vector.broadcast %352 : f32 to vector<8x128xf32>
    %354 = arith.select %344, %353, %337 : vector<8x128xi1>, vector<8x128xf32>
    %c8_i32 = arith.constant 8 : i32
    %355 = arith.addi %342, %c8_i32 : i32
    %356 = arith.index_cast %355 : i32 to index
    %357 = memref.load %arg2[%356] : memref<100xf32, #tpu.memory_space<smem>>
    %358 = vector.broadcast %357 : f32 to vector<8x128xf32>
    %359 = arith.select %344, %358, %338 : vector<8x128xi1>, vector<8x128xf32>
    %c9_i32 = arith.constant 9 : i32
    %360 = arith.addi %342, %c9_i32 : i32
    %361 = arith.index_cast %360 : i32 to index
    %362 = memref.load %arg2[%361] : memref<100xf32, #tpu.memory_space<smem>>
    %363 = vector.broadcast %362 : f32 to vector<8x128xf32>
    %364 = arith.select %344, %363, %339 : vector<8x128xi1>, vector<8x128xf32>
    %c5_i32_112 = arith.constant 5 : i32
    %365 = arith.muli %arg1, %c5_i32_112 : i32
    %c1_i32_113 = arith.constant 1 : i32
    %366 = arith.addi %365, %c1_i32_113 : i32
    %c10_i32_114 = arith.constant 10 : i32
    %367 = arith.muli %366, %c10_i32_114 : i32
    %c1_i32_115 = arith.constant 1 : i32
    %368 = vector.broadcast %c1_i32_115 : i32 to vector<8x128xi32>
    %369 = arith.cmpi eq, %317, %368 : vector<8x128xi32>
    %c6_i32_116 = arith.constant 6 : i32
    %370 = arith.addi %367, %c6_i32_116 : i32
    %371 = arith.index_cast %370 : i32 to index
    %372 = memref.load %arg2[%371] : memref<100xf32, #tpu.memory_space<smem>>
    %373 = vector.broadcast %372 : f32 to vector<8x128xf32>
    %374 = arith.select %369, %373, %349 : vector<8x128xi1>, vector<8x128xf32>
    %c7_i32_117 = arith.constant 7 : i32
    %375 = arith.addi %367, %c7_i32_117 : i32
    %376 = arith.index_cast %375 : i32 to index
    %377 = memref.load %arg2[%376] : memref<100xf32, #tpu.memory_space<smem>>
    %378 = vector.broadcast %377 : f32 to vector<8x128xf32>
    %379 = arith.select %369, %378, %354 : vector<8x128xi1>, vector<8x128xf32>
    %c8_i32_118 = arith.constant 8 : i32
    %380 = arith.addi %367, %c8_i32_118 : i32
    %381 = arith.index_cast %380 : i32 to index
    %382 = memref.load %arg2[%381] : memref<100xf32, #tpu.memory_space<smem>>
    %383 = vector.broadcast %382 : f32 to vector<8x128xf32>
    %384 = arith.select %369, %383, %359 : vector<8x128xi1>, vector<8x128xf32>
    %c9_i32_119 = arith.constant 9 : i32
    %385 = arith.addi %367, %c9_i32_119 : i32
    %386 = arith.index_cast %385 : i32 to index
    %387 = memref.load %arg2[%386] : memref<100xf32, #tpu.memory_space<smem>>
    %388 = vector.broadcast %387 : f32 to vector<8x128xf32>
    %389 = arith.select %369, %388, %364 : vector<8x128xi1>, vector<8x128xf32>
    %c5_i32_120 = arith.constant 5 : i32
    %390 = arith.muli %arg1, %c5_i32_120 : i32
    %c2_i32_121 = arith.constant 2 : i32
    %391 = arith.addi %390, %c2_i32_121 : i32
    %c10_i32_122 = arith.constant 10 : i32
    %392 = arith.muli %391, %c10_i32_122 : i32
    %c2_i32_123 = arith.constant 2 : i32
    %393 = vector.broadcast %c2_i32_123 : i32 to vector<8x128xi32>
    %394 = arith.cmpi eq, %317, %393 : vector<8x128xi32>
    %c6_i32_124 = arith.constant 6 : i32
    %395 = arith.addi %392, %c6_i32_124 : i32
    %396 = arith.index_cast %395 : i32 to index
    %397 = memref.load %arg2[%396] : memref<100xf32, #tpu.memory_space<smem>>
    %398 = vector.broadcast %397 : f32 to vector<8x128xf32>
    %399 = arith.select %394, %398, %374 : vector<8x128xi1>, vector<8x128xf32>
    %c7_i32_125 = arith.constant 7 : i32
    %400 = arith.addi %392, %c7_i32_125 : i32
    %401 = arith.index_cast %400 : i32 to index
    %402 = memref.load %arg2[%401] : memref<100xf32, #tpu.memory_space<smem>>
    %403 = vector.broadcast %402 : f32 to vector<8x128xf32>
    %404 = arith.select %394, %403, %379 : vector<8x128xi1>, vector<8x128xf32>
    %c8_i32_126 = arith.constant 8 : i32
    %405 = arith.addi %392, %c8_i32_126 : i32
    %406 = arith.index_cast %405 : i32 to index
    %407 = memref.load %arg2[%406] : memref<100xf32, #tpu.memory_space<smem>>
    %408 = vector.broadcast %407 : f32 to vector<8x128xf32>
    %409 = arith.select %394, %408, %384 : vector<8x128xi1>, vector<8x128xf32>
    %c9_i32_127 = arith.constant 9 : i32
    %410 = arith.addi %392, %c9_i32_127 : i32
    %411 = arith.index_cast %410 : i32 to index
    %412 = memref.load %arg2[%411] : memref<100xf32, #tpu.memory_space<smem>>
    %413 = vector.broadcast %412 : f32 to vector<8x128xf32>
    %414 = arith.select %394, %413, %389 : vector<8x128xi1>, vector<8x128xf32>
    %c5_i32_128 = arith.constant 5 : i32
    %415 = arith.muli %arg1, %c5_i32_128 : i32
    %c3_i32_129 = arith.constant 3 : i32
    %416 = arith.addi %415, %c3_i32_129 : i32
    %c10_i32_130 = arith.constant 10 : i32
    %417 = arith.muli %416, %c10_i32_130 : i32
    %c3_i32_131 = arith.constant 3 : i32
    %418 = vector.broadcast %c3_i32_131 : i32 to vector<8x128xi32>
    %419 = arith.cmpi eq, %317, %418 : vector<8x128xi32>
    %c6_i32_132 = arith.constant 6 : i32
    %420 = arith.addi %417, %c6_i32_132 : i32
    %421 = arith.index_cast %420 : i32 to index
    %422 = memref.load %arg2[%421] : memref<100xf32, #tpu.memory_space<smem>>
    %423 = vector.broadcast %422 : f32 to vector<8x128xf32>
    %424 = arith.select %419, %423, %399 : vector<8x128xi1>, vector<8x128xf32>
    %c7_i32_133 = arith.constant 7 : i32
    %425 = arith.addi %417, %c7_i32_133 : i32
    %426 = arith.index_cast %425 : i32 to index
    %427 = memref.load %arg2[%426] : memref<100xf32, #tpu.memory_space<smem>>
    %428 = vector.broadcast %427 : f32 to vector<8x128xf32>
    %429 = arith.select %419, %428, %404 : vector<8x128xi1>, vector<8x128xf32>
    %c8_i32_134 = arith.constant 8 : i32
    %430 = arith.addi %417, %c8_i32_134 : i32
    %431 = arith.index_cast %430 : i32 to index
    %432 = memref.load %arg2[%431] : memref<100xf32, #tpu.memory_space<smem>>
    %433 = vector.broadcast %432 : f32 to vector<8x128xf32>
    %434 = arith.select %419, %433, %409 : vector<8x128xi1>, vector<8x128xf32>
    %c9_i32_135 = arith.constant 9 : i32
    %435 = arith.addi %417, %c9_i32_135 : i32
    %436 = arith.index_cast %435 : i32 to index
    %437 = memref.load %arg2[%436] : memref<100xf32, #tpu.memory_space<smem>>
    %438 = vector.broadcast %437 : f32 to vector<8x128xf32>
    %439 = arith.select %419, %438, %414 : vector<8x128xi1>, vector<8x128xf32>
    %c5_i32_136 = arith.constant 5 : i32
    %440 = arith.muli %arg1, %c5_i32_136 : i32
    %c4_i32_137 = arith.constant 4 : i32
    %441 = arith.addi %440, %c4_i32_137 : i32
    %c10_i32_138 = arith.constant 10 : i32
    %442 = arith.muli %441, %c10_i32_138 : i32
    %c4_i32_139 = arith.constant 4 : i32
    %443 = vector.broadcast %c4_i32_139 : i32 to vector<8x128xi32>
    %444 = arith.cmpi eq, %317, %443 : vector<8x128xi32>
    %c6_i32_140 = arith.constant 6 : i32
    %445 = arith.addi %442, %c6_i32_140 : i32
    %446 = arith.index_cast %445 : i32 to index
    %447 = memref.load %arg2[%446] : memref<100xf32, #tpu.memory_space<smem>>
    %448 = vector.broadcast %447 : f32 to vector<8x128xf32>
    %449 = arith.select %444, %448, %424 : vector<8x128xi1>, vector<8x128xf32>
    %c7_i32_141 = arith.constant 7 : i32
    %450 = arith.addi %442, %c7_i32_141 : i32
    %451 = arith.index_cast %450 : i32 to index
    %452 = memref.load %arg2[%451] : memref<100xf32, #tpu.memory_space<smem>>
    %453 = vector.broadcast %452 : f32 to vector<8x128xf32>
    %454 = arith.select %444, %453, %429 : vector<8x128xi1>, vector<8x128xf32>
    %c8_i32_142 = arith.constant 8 : i32
    %455 = arith.addi %442, %c8_i32_142 : i32
    %456 = arith.index_cast %455 : i32 to index
    %457 = memref.load %arg2[%456] : memref<100xf32, #tpu.memory_space<smem>>
    %458 = vector.broadcast %457 : f32 to vector<8x128xf32>
    %459 = arith.select %444, %458, %434 : vector<8x128xi1>, vector<8x128xf32>
    %c9_i32_143 = arith.constant 9 : i32
    %460 = arith.addi %442, %c9_i32_143 : i32
    %461 = arith.index_cast %460 : i32 to index
    %462 = memref.load %arg2[%461] : memref<100xf32, #tpu.memory_space<smem>>
    %463 = vector.broadcast %462 : f32 to vector<8x128xf32>
    %464 = arith.select %444, %463, %439 : vector<8x128xi1>, vector<8x128xf32>
    %465 = arith.subf %5, %1 : vector<8x128xf32>
    %cst_144 = arith.constant 1.000000e+00 : f32
    %466 = vector.broadcast %cst_144 : f32 to vector<8x128xf32>
    %467 = arith.addf %465, %466 : vector<8x128xf32>
    %468 = arith.subf %7, %3 : vector<8x128xf32>
    %cst_145 = arith.constant 1.000000e+00 : f32
    %469 = vector.broadcast %cst_145 : f32 to vector<8x128xf32>
    %470 = arith.addf %468, %469 : vector<8x128xf32>
    %cst_146 = arith.constant 5.000000e-01 : f32
    %471 = vector.broadcast %cst_146 : f32 to vector<8x128xf32>
    %472 = arith.mulf %471, %467 : vector<8x128xf32>
    %473 = arith.addf %1, %472 : vector<8x128xf32>
    %cst_147 = arith.constant 5.000000e-01 : f32
    %474 = vector.broadcast %cst_147 : f32 to vector<8x128xf32>
    %475 = arith.mulf %474, %470 : vector<8x128xf32>
    %476 = arith.addf %3, %475 : vector<8x128xf32>
    %477 = arith.subf %449, %473 : vector<8x128xf32>
    %478 = arith.divf %477, %467 : vector<8x128xf32>
    %479 = arith.subf %454, %476 : vector<8x128xf32>
    %480 = arith.divf %479, %470 : vector<8x128xf32>
    %481 = arith.divf %459, %467 : vector<8x128xf32>
    %482 = math.log %481 : vector<8x128xf32>
    %483 = arith.divf %464, %470 : vector<8x128xf32>
    %484 = math.log %483 : vector<8x128xf32>
    %cst_148 = arith.constant 0.000000e+00 : f32
    %485 = vector.broadcast %cst_148 : f32 to vector<8x128xf32>
    %486 = arith.select %320, %478, %485 : vector<8x128xi1>, vector<8x128xf32>
    %c0_149 = arith.constant 0 : index
    %c0_150 = arith.constant 0 : index
    %c0_151 = arith.constant 0 : index
    %c0_152 = arith.constant 0 : index
    %487 = vector.load %arg7[%c0_149, %c0_150, %c0_151, %c0_152] : memref<1x4x8x128xf32, #tpu.memory_space<vmem>>, vector<1x1x8x128xf32>
    %488 = vector.shape_cast %487 : vector<1x1x8x128xf32> to vector<8x128xf32>
    %489 = vector.shape_cast %486 : vector<8x128xf32> to vector<1x1x8x128xf32>
    tpu.vector_store %arg7[%c0_149, %c0_150, %c0_151, %c0_152], %489 {strides = array<i32>} : memref<1x4x8x128xf32, #tpu.memory_space<vmem>>, vector<1x1x8x128xf32>,
    %cst_153 = arith.constant 0.000000e+00 : f32
    %490 = vector.broadcast %cst_153 : f32 to vector<8x128xf32>
    %491 = arith.select %320, %480, %490 : vector<8x128xi1>, vector<8x128xf32>
    %c0_154 = arith.constant 0 : index
    %c1_155 = arith.constant 1 : index
    %c0_156 = arith.constant 0 : index
    %c0_157 = arith.constant 0 : index
    %492 = vector.load %arg7[%c0_154, %c1_155, %c0_156, %c0_157] : memref<1x4x8x128xf32, #tpu.memory_space<vmem>>, vector<1x1x8x128xf32>
    %493 = vector.shape_cast %492 : vector<1x1x8x128xf32> to vector<8x128xf32>
    %494 = vector.shape_cast %491 : vector<8x128xf32> to vector<1x1x8x128xf32>
    tpu.vector_store %arg7[%c0_154, %c1_155, %c0_156, %c0_157], %494 {strides = array<i32>} : memref<1x4x8x128xf32, #tpu.memory_space<vmem>>, vector<1x1x8x128xf32>,
    %cst_158 = arith.constant 0.000000e+00 : f32
    %495 = vector.broadcast %cst_158 : f32 to vector<8x128xf32>
    %496 = arith.select %320, %482, %495 : vector<8x128xi1>, vector<8x128xf32>
    %c0_159 = arith.constant 0 : index
    %c2_160 = arith.constant 2 : index
    %c0_161 = arith.constant 0 : index
    %c0_162 = arith.constant 0 : index
    %497 = vector.load %arg7[%c0_159, %c2_160, %c0_161, %c0_162] : memref<1x4x8x128xf32, #tpu.memory_space<vmem>>, vector<1x1x8x128xf32>
    %498 = vector.shape_cast %497 : vector<1x1x8x128xf32> to vector<8x128xf32>
    %499 = vector.shape_cast %496 : vector<8x128xf32> to vector<1x1x8x128xf32>
    tpu.vector_store %arg7[%c0_159, %c2_160, %c0_161, %c0_162], %499 {strides = array<i32>} : memref<1x4x8x128xf32, #tpu.memory_space<vmem>>, vector<1x1x8x128xf32>,
    %cst_163 = arith.constant 0.000000e+00 : f32
    %500 = vector.broadcast %cst_163 : f32 to vector<8x128xf32>
    %501 = arith.select %320, %484, %500 : vector<8x128xi1>, vector<8x128xf32>
    %c0_164 = arith.constant 0 : index
    %c3_165 = arith.constant 3 : index
    %c0_166 = arith.constant 0 : index
    %c0_167 = arith.constant 0 : index
    %502 = vector.load %arg7[%c0_164, %c3_165, %c0_166, %c0_167] : memref<1x4x8x128xf32, #tpu.memory_space<vmem>>, vector<1x1x8x128xf32>
    %503 = vector.shape_cast %502 : vector<1x1x8x128xf32> to vector<8x128xf32>
    %504 = vector.shape_cast %501 : vector<8x128xf32> to vector<1x1x8x128xf32>
    tpu.vector_store %arg7[%c0_164, %c3_165, %c0_166, %c0_167], %504 {strides = array<i32>} : memref<1x4x8x128xf32, #tpu.memory_space<vmem>>, vector<1x1x8x128xf32>,
    return
  }
  func.func @transform_0(%arg0: i32, %arg1: i32) -> i32 {
    %c0_i32 = arith.constant 0 : i32
    %c0_i32_0 = arith.constant 0 : i32
    return %c0_i32 : i32
  }
  func.func @transform_1(%arg0: i32, %arg1: i32) -> i32 {
    %c0_i32 = arith.constant 0 : i32
    %c0_i32_0 = arith.constant 0 : i32
    return %c0_i32 : i32
  }
  func.func @transform_2(%arg0: i32, %arg1: i32) -> (i32, i32, i32) {
    %c0_i32 = arith.constant 0 : i32
    %c0_i32_0 = arith.constant 0 : i32
    %c0_i32_1 = arith.constant 0 : i32
    return %c0_i32, %arg0, %c0_i32_0 : i32, i32, i32
  }
  func.func @transform_3(%arg0: i32, %arg1: i32) -> (i32, i32) {
    %c0_i32 = arith.constant 0 : i32
    %c0_i32_0 = arith.constant 0 : i32
    return %arg0, %c0_i32 : i32, i32
  }
  func.func @transform_4(%arg0: i32, %arg1: i32) -> (i32, i32, i32) {
    %c0_i32 = arith.constant 0 : i32
    %c0_i32_0 = arith.constant 0 : i32
    return %arg1, %arg0, %c0_i32 : i32, i32, i32
  }
  func.func @transform_5(%arg0: i32, %arg1: i32) -> (i32, i32, i32, i32) {
    %c0_i32 = arith.constant 0 : i32
    %c0_i32_0 = arith.constant 0 : i32
    %c0_i32_1 = arith.constant 0 : i32
    return %arg1, %c0_i32, %arg0, %c0_i32_0 : i32, i32, i32, i32
  }
}

</mosaic_0001>

<llo_original>
// kernel: _anchor_target_device.3
$region0: #{_anchor_target_device.3}
  #allocation0 [shape = 'u32[]', space=smem, size = 0x4, offset = 0x4, fixed_abs, tag = 'smem constant byte address 0x4 - core index']
  #allocation1 [shape = 'u32[144,128]{1,0:T(1,128)}', space=vmem, size = 0x12000, scoped, tag = 'internal scratch']
  %s0 = inlined_call_operand.vmem [shape: f32[100], index: 0, kind: input, shape index: {}]
  %s1 = inlined_call_operand.vmem [shape: f32[10], index: 1, kind: input, shape index: {}]
  %s2 = inlined_call_operand.vmem [shape: f32[4,8,128], index: 2, kind: input, shape index: {}]
  %s3 = inlined_call_operand.vmem [shape: f32[8,128], index: 3, kind: input, shape index: {}]
  %s4 = inlined_call_operand.vmem [shape: f32[2,8,128], index: 4, kind: output, shape index: {0}]
  %s5 = inlined_call_operand.vmem [shape: f32[2,4,8,128], index: 5, kind: output, shape index: {1}]
  %6 = xla_tuple %s4, %s5
  %s7 = sld [smem:[#allocation0]]
  $region65: #{_anchor_target_device.3} parent=0
    _
  %s9 = ssub.s32 1, %s7
  %s10 = scalar_select 0, %s9, %s7
  $region1: #{_anchor_target_device.3} parent=0
    #allocation2 [shape = 'u8[512]{0}', space=smem, size = 0x200, scoped, tag = 'input window, operand 0, single buffered']
    #allocation3 [shape = 's32[2]{0}', space=sflag, size = 0x8, scoped, tag = 'scoped memory for _anchor_target_device.3']
    #allocation4 [shape = 'u8[512]{0}', space=smem, size = 0x200, scoped, tag = 'input window, operand 1, single buffered']
    #allocation5 [shape = 's32[1]{0}', space=sflag, size = 0x4, scoped, tag = 'scoped memory for _anchor_target_device.3']
    %11 = vsyncpa [#allocation3], 0
    %12 = vsyncpa [#allocation5], 0
    loop: start=0, step=1, limit=4
    $region2: #{_anchor_target_device.3} parent=1 // loop_pre_header
      _
    $region3: #{_anchor_target_device.3} parent=1 // loop_header
      %s14 = sphi 0, %s18
      %p15 = scmp.ge.s32.totalorder %s14, 4
      %s21 = sphi 0, %s33
      %s22 = sphi 0, %s29
      %s23 = sphi 0, %s21
      %s24 = sphi 0, %s22
      %s25 = sphi 0, %s23
      %s26 = sphi 0, %s24
      %s34 = sphi 0, %s34
      %s36 = sphi 0, %s34
      %s37 = sphi 0, %s36
      %s51 = sphi 0, %s37
      %s55 = sphi 0, %s55
      %s57 = sphi 0, %s55
      %s58 = sphi 0, %s57
      %s72 = sphi 0, %s58
      %s78 = sphi 0, %s80
      %s81 = sphi 0, %s78
      %s82 = sphi 0, %s81
      %s98 = sphi 0, %s82
      %s104 = sphi 0, %s106
      %s107 = sphi 0, %s104
      %s108 = sphi 0, %s107
      %s124 = sphi 0, %s108
      %s132 = sphi 0, %s134
      %s135 = sphi 0, %s132
      %s136 = sphi 0, %s135
      %s152 = sphi 0, %s136
      %s160 = sphi 0, %s162
      %s163 = sphi 0, %s160
      %s164 = sphi 0, %s163
      %s180 = sphi 0, %s164
    $region4: #{_anchor_target_device.3} parent=1 // loop_header_branch
      %17 = sbr.rel (%p15) target = $region8
    $region5: #{_anchor_target_device.3} parent=1 // loop_body
      %s19 = ssub.s32 %s14, 1
      %s20 = ssub.s32 %s14, 2
      %s27 = sadd.s32 1, %s22
      %p28 = scmp.ge.s32.totalorder %s27, 2
      %s29 = scalar_select %p28, 0, %s27
      %s30 = sadd.s32 1, %s21
      %s31 = scalar_select %p28, %s30, %s21
      %p32 = scmp.ge.s32.totalorder %s31, 1
      %s33 = scalar_select %p32, 0, %s31
      %s35 = sadd.s32 %s34, 1
      %p38 = scmp.eq.s32.totalorder %s14, 1
      %p39 = scmp.ne.s32.totalorder %s34, %s36
      %p40 = scmp.eq.s32.totalorder %s14, 0
      %p41 = por %p39, %p40
      %p42 = scmp.ne.s32.totalorder %s34, %s36
      %p43 = scmp.eq.s32.totalorder %s19, 1
      %p44 = por %p42, %p43
      %p45 = scmp.ne.s32.totalorder %s36, %s37
      %p46 = scmp.eq.s32.totalorder %s19, 0
      %p47 = por %p45, %p46
      %p48 = scmp.ne.s32.totalorder %s36, %s37
      %p49 = scmp.eq.s32.totalorder %s20, 1
      %p50 = por %p48, %p49
      %p52 = scmp.ne.s32.totalorder %s37, %s51
      %p53 = scmp.eq.s32.totalorder %s20, 0
      %p54 = por %p52, %p53
      %s56 = sadd.s32 %s55, 1
      %p59 = scmp.eq.s32.totalorder %s14, 1
      %p60 = scmp.ne.s32.totalorder %s55, %s57
      %p61 = scmp.eq.s32.totalorder %s14, 0
      %p62 = por %p60, %p61
      %p63 = scmp.ne.s32.totalorder %s55, %s57
      %p64 = scmp.eq.s32.totalorder %s19, 1
      %p65 = por %p63, %p64
      %p66 = scmp.ne.s32.totalorder %s57, %s58
      %p67 = scmp.eq.s32.totalorder %s19, 0
      %p68 = por %p66, %p67
      %p69 = scmp.ne.s32.totalorder %s57, %s58
      %p70 = scmp.eq.s32.totalorder %s20, 1
      %p71 = por %p69, %p70
      %p73 = scmp.ne.s32.totalorder %s58, %s72
      %p74 = scmp.eq.s32.totalorder %s20, 0
      %p75 = por %p73, %p74
      %s76 = ssub.s32 %s21, %s33
      %p77 = scmp.eq.s32.totalorder %s76, 0
      %s79 = sadd.s32 %s78, 1
      %s80 = scalar_select %p77, %s78, %s79
      %p83 = pneg %p77
      %p84 = scmp.eq.s32.totalorder %s14, 1
      %p85 = por %p83, %p84
      %p86 = scmp.ne.s32.totalorder %s78, %s81
      %p87 = scmp.eq.s32.totalorder %s14, 0
      %p88 = por %p86, %p87
      %p89 = scmp.ne.s32.totalorder %s78, %s81
      %p90 = scmp.eq.s32.totalorder %s19, 1
      %p91 = por %p89, %p90
      %p92 = scmp.ne.s32.totalorder %s81, %s82
      %p93 = scmp.eq.s32.totalorder %s19, 0
      %p94 = por %p92, %p93
      %p95 = scmp.ne.s32.totalorder %s81, %s82
      %p96 = scmp.eq.s32.totalorder %s20, 1
      %p97 = por %p95, %p96
      %p99 = scmp.ne.s32.totalorder %s82, %s98
      %p100 = scmp.eq.s32.totalorder %s20, 0
      %p101 = por %p99, %p100
      %s102 = ssub.s32 %s21, %s33
      %p103 = scmp.eq.s32.totalorder %s102, 0
      %s105 = sadd.s32 %s104, 1
      %s106 = scalar_select %p103, %s104, %s105
      %p109 = pneg %p103
      %p110 = scmp.eq.s32.totalorder %s14, 1
      %p111 = por %p109, %p110
      %p112 = scmp.ne.s32.totalorder %s104, %s107
      %p113 = scmp.eq.s32.totalorder %s14, 0
      %p114 = por %p112, %p113
      %p115 = scmp.ne.s32.totalorder %s104, %s107
      %p116 = scmp.eq.s32.totalorder %s19, 1
      %p117 = por %p115, %p116
      %p118 = scmp.ne.s32.totalorder %s107, %s108
      %p119 = scmp.eq.s32.totalorder %s19, 0
      %p120 = por %p118, %p119
      %p121 = scmp.ne.s32.totalorder %s107, %s108
      %p122 = scmp.eq.s32.totalorder %s20, 1
      %p123 = por %p121, %p122
      %p125 = scmp.ne.s32.totalorder %s108, %s124
      %p126 = scmp.eq.s32.totalorder %s20, 0
      %p127 = por %p125, %p126
      %s128 = ssub.s32 %s22, %s29
      %s129 = ssub.s32 %s21, %s33
      %s130 = sor.u32 %s128, %s129
      %p131 = scmp.eq.s32.totalorder %s130, 0
      %s133 = sadd.s32 %s132, 1
      %s134 = scalar_select %p131, %s132, %s133
      %p137 = pneg %p131
      %p138 = scmp.eq.s32.totalorder %s14, 1
      %p139 = por %p137, %p138
      %p140 = scmp.ne.s32.totalorder %s132, %s135
      %p141 = scmp.eq.s32.totalorder %s14, 0
      %p142 = por %p140, %p141
      %p143 = scmp.ne.s32.totalorder %s132, %s135
      %p144 = scmp.eq.s32.totalorder %s19, 1
      %p145 = por %p143, %p144
      %p146 = scmp.ne.s32.totalorder %s135, %s136
      %p147 = scmp.eq.s32.totalorder %s19, 0
      %p148 = por %p146, %p147
      %p149 = scmp.ne.s32.totalorder %s135, %s136
      %p150 = scmp.eq.s32.totalorder %s20, 1
      %p151 = por %p149, %p150
      %p153 = scmp.ne.s32.totalorder %s136, %s152
      %p154 = scmp.eq.s32.totalorder %s20, 0
      %p155 = por %p153, %p154
      %s156 = ssub.s32 %s22, %s29
      %s157 = ssub.s32 %s21, %s33
      %s158 = sor.u32 %s156, %s157
      %p159 = scmp.eq.s32.totalorder %s158, 0
      %s161 = sadd.s32 %s160, 1
      %s162 = scalar_select %p159, %s160, %s161
      %p165 = pneg %p159
      %p166 = scmp.eq.s32.totalorder %s14, 1
      %p167 = por %p165, %p166
      %p168 = scmp.ne.s32.totalorder %s160, %s163
      %p169 = scmp.eq.s32.totalorder %s14, 0
      %p170 = por %p168, %p169
      %p171 = scmp.ne.s32.totalorder %s160, %s163
      %p172 = scmp.eq.s32.totalorder %s19, 1
      %p173 = por %p171, %p172
      %p174 = scmp.ne.s32.totalorder %s163, %s164
      %p175 = scmp.eq.s32.totalorder %s19, 0
      %p176 = por %p174, %p175
      %p177 = scmp.ne.s32.totalorder %s163, %s164
      %p178 = scmp.eq.s32.totalorder %s20, 1
      %p179 = por %p177, %p178
      %p181 = scmp.ne.s32.totalorder %s164, %s180
      %p182 = scmp.eq.s32.totalorder %s20, 0
      %p183 = por %p181, %p182
      %p184 = scmp.le.s32.totalorder 1, %s14
      %p185 = scmp.lt.s32.totalorder %s14, 3
      %p186 = pnand %p184, %p185
      %p187 = pneg %p186
      // Predicated region
      $region9: #{_anchor_target_device.3} parent=5 // pred_check
        _
      $region10: #{_anchor_target_device.3} parent=5 // pred_check_branch
        %189 = sbr.rel (%p186) target = $region12
      $region11: #{_anchor_target_device.3} parent=5 // pred_region
        %s190 = ssub.s32 %s14, 1
        // Predicated region
        $region13: #{_anchor_target_device.3} parent=11 // pred_check
          %p191 = pneg %p47
        $region14: #{_anchor_target_device.3} parent=11 // pred_check_branch
          %193 = sbr.rel (%p191) target = $region16
        $region15: #{_anchor_target_device.3} parent=11 // pred_region
          %s195 = ssub.s32 16, 16
          %196 = vsyncadd [#allocation3], %s195
          %s198 = sshll.u32 %s0, 4
          %s199 = int_to_ptr.vmem [resolvable:$true] %s198
          %201 = dma.vmem_to_smem %s199, 16, [#allocation2], [#allocation3]
        $region16: #{_anchor_target_device.3} parent=11 // pred_fallthru
          _
        // Predicated region
        $region17: #{_anchor_target_device.3} parent=11 // pred_check
          %p202 = pneg %p68
        $region18: #{_anchor_target_device.3} parent=11 // pred_check_branch
          %204 = sbr.rel (%p202) target = $region20
        $region19: #{_anchor_target_device.3} parent=11 // pred_region
          %s206 = ssub.s32 16, 16
          %207 = vsyncadd [#allocation5], %s206
          %s209 = sshll.u32 %s1, 4
          %s210 = int_to_ptr.vmem [resolvable:$true] %s209
          %212 = dma.vmem_to_smem %s210, 16, [#allocation4], [#allocation5]
        $region20: #{_anchor_target_device.3} parent=11 // pred_fallthru
          _
        // Predicated region
        $region21: #{_anchor_target_device.3} parent=11 // pred_check
          %p213 = pneg %p94
        $region22: #{_anchor_target_device.3} parent=11 // pred_check_branch
          %215 = sbr.rel (%p213) target = $region24
        $region23: #{_anchor_target_device.3} parent=11 // pred_region
          %p216 = scmp.lt.s32.totalorder %s23, 0
          %s217 = scalar_select %p216, %s23, 0
          %s218 = smul.addr %s217, 8
          %s219 = scalar_lea.vmem %s2, %s218
        $region24: #{_anchor_target_device.3} parent=11 // pred_fallthru
          _
        // Predicated region
        $region25: #{_anchor_target_device.3} parent=11 // pred_check
          %p220 = pneg %p120
        $region26: #{_anchor_target_device.3} parent=11 // pred_check_branch
          %222 = sbr.rel (%p220) target = $region28
        $region27: #{_anchor_target_device.3} parent=11 // pred_region
          %p223 = scmp.lt.s32.totalorder %s23, 0
          %s224 = scalar_select %p223, %s23, 0
          %s225 = smul.addr %s224, 8
          %s226 = scalar_lea.vmem %s3, %s225
        $region28: #{_anchor_target_device.3} parent=11 // pred_fallthru
          _
      $region12: #{_anchor_target_device.3} parent=5 // pred_fallthru
        _
      %p227 = scmp.lt.s32.totalorder %s14, 2
      // Predicated region
      $region29: #{_anchor_target_device.3} parent=5 // pred_check
        %p228 = pneg %p227
      $region30: #{_anchor_target_device.3} parent=5 // pred_check_branch
        %230 = sbr.rel (%p228) target = $region32
      $region31: #{_anchor_target_device.3} parent=5 // pred_region
        _
      $region32: #{_anchor_target_device.3} parent=5 // pred_fallthru
        _
      %p231 = scmp.le.s32.totalorder 1, %s14
      %p232 = scmp.lt.s32.totalorder %s14, 3
      %p233 = pnand %p231, %p232
      %p234 = pneg %p233
      // Predicated region
      $region33: #{_anchor_target_device.3} parent=5 // pred_check
        _
      $region34: #{_anchor_target_device.3} parent=5 // pred_check_branch
        %236 = sbr.rel (%p233) target = $region36
      $region35: #{_anchor_target_device.3} parent=5 // pred_region
        %s237 = ssub.s32 %s14, 1
        // Predicated region
        $region37: #{_anchor_target_device.3} parent=35 // pred_check
          %p238 = pneg %p47
        $region38: #{_anchor_target_device.3} parent=35 // pred_check_branch
          %240 = sbr.rel (%p238) target = $region40
        $region39: #{_anchor_target_device.3} parent=35 // pred_region
          %241 = dma.done [#allocation3], 16
        $region40: #{_anchor_target_device.3} parent=35 // pred_fallthru
          _
        // Predicated region
        $region41: #{_anchor_target_device.3} parent=35 // pred_check
          %p242 = pneg %p68
        $region42: #{_anchor_target_device.3} parent=35 // pred_check_branch
          %244 = sbr.rel (%p242) target = $region44
        $region43: #{_anchor_target_device.3} parent=35 // pred_region
          %245 = dma.done [#allocation5], 16
        $region44: #{_anchor_target_device.3} parent=35 // pred_fallthru
          _
        %246 = sfence
        %p247 = pneg %p47
        %p248 = pneg %p44
        %p249 = pneg %p68
        %p250 = pneg %p65
        %p251 = scmp.lt.s32.totalorder %s23, 0
        %s252 = scalar_select %p251, %s23, 0
        %s253 = smul.addr %s252, 8
        %s254 = scalar_lea.vmem %s2, %s253
        %p255 = pneg %p94
        %p256 = pneg %p91
        %p257 = scmp.lt.s32.totalorder %s23, 0
        %s258 = scalar_select %p257, %s23, 0
        %s259 = smul.addr %s258, 8
        %s260 = scalar_lea.vmem %s3, %s259
        %p261 = pneg %p120
        %p262 = pneg %p117
        %p263 = pneg %p148
        %p264 = pneg %p145
        %p265 = scmp.lt.s32.totalorder %s24, 1
        %s266 = scalar_select %p265, %s24, 1
        %p267 = scmp.lt.s32.totalorder %s23, 0
        %s268 = scalar_select %p267, %s23, 0
        %s269 = sadd.s32 %s268, %s266
        %s270 = smul.addr %s269, 8
        %s271 = scalar_lea.vmem %s4, %s270
        %p272 = pneg %p176
        %p273 = pneg %p173
        %p274 = scmp.lt.s32.totalorder %s24, 1
        %s275 = scalar_select %p274, %s24, 1
        %p276 = scmp.lt.s32.totalorder %s23, 0
        %s277 = scalar_select %p276, %s23, 0
        %s278 = smul.addr %s275, 4
        %s279 = sadd.s32 %s277, %s278
        %s280 = smul.addr %s279, 8
        %s281 = scalar_lea.vmem %s5, %s280
        %p282 = scmp.lt.s32.totalorder %s23, 0
        %s283 = scalar_select %p282, %s23, 0
        %s284 = smul.addr %s283, 8
        %s285 = scalar_lea.vmem %s2, %s284
        %p286 = scmp.lt.s32.totalorder %s23, 0
        %s287 = scalar_select %p286, %s23, 0
        %s288 = smul.addr %s287, 8
        %s289 = scalar_lea.vmem %s3, %s288
        %p290 = scmp.lt.s32.totalorder %s24, 1
        %s291 = scalar_select %p290, %s24, 1
        %p292 = scmp.lt.s32.totalorder %s23, 0
        %s293 = scalar_select %p292, %s23, 0
        %s294 = sadd.s32 %s293, %s291
        %s295 = smul.addr %s294, 8
        %s296 = scalar_lea.vmem %s4, %s295
        %p297 = scmp.lt.s32.totalorder %s24, 1
        %s298 = scalar_select %p297, %s24, 1
        %p299 = scmp.lt.s32.totalorder %s23, 0
        %s300 = scalar_select %p299, %s23, 0
        %s301 = smul.addr %s298, 4
        %s302 = sadd.s32 %s300, %s301
        %s303 = smul.addr %s302, 8
        %s304 = scalar_lea.vmem %s5, %s303
        %v305 = vld [vmem:[%s285] sm:$0xff]
        %s306 = scalar_lea.vmem %s285, 8
        %v307 = vld [vmem:[%s306] sm:$0xff]
        %s308 = scalar_lea.vmem %s285, 16
        %v309 = vld [vmem:[%s308] sm:$0xff]
        %s310 = scalar_lea.vmem %s285, 24
        %v311 = vld [vmem:[%s310] sm:$0xff]
        %v312 = vsub.f32 %v309, %v305
        %v313 = vadd.f32 %v312, 1.0
        %v314 = vsub.f32 %v311, %v307
        %v315 = vadd.f32 %v314, 1.0
        %v316 = vmul.f32 %v313, %v315
        %vm317 = vcmp.eq.f32.partialorder %v313, 1.0
        %vm318 = vcmp.eq.f32.partialorder %v315, 1.0
        %vm319 = vmand %vm317, %vm318
        %s320 = smul.u32 %s24, 50
        %s321 = sld [smem:[#allocation2 + %s320]]
        %s322 = sadd.s32 %s320, 1
        %s323 = sld [smem:[#allocation2 + %s322]]
        %s324 = sadd.s32 %s320, 2
        %s325 = sld [smem:[#allocation2 + %s324]]
        %s326 = sadd.s32 %s320, 3
        %s327 = sld [smem:[#allocation2 + %s326]]
        %s328 = sadd.s32 %s320, 4
        %s329 = sld [smem:[#allocation2 + %s328]]
        %s330 = sadd.s32 %s320, 5
        %s331 = sld [smem:[#allocation2 + %s330]]
        %v332 = vstv %s325
        %v333 = vmin.f32 %v309, %v332
        %v334 = vstv %s321
        %v335 = vmax.f32 %v305, %v334
        %v336 = vsub.f32 %v333, %v335
        %v337 = vadd.f32 %v336, 1.0
        %v338 = vmax.f32 %v337, 0.0
        %v339 = vstv %s327
        %v340 = vmin.f32 %v311, %v339
        %v341 = vstv %s323
        %v342 = vmax.f32 %v307, %v341
        %v343 = vsub.f32 %v340, %v342
        %v344 = vadd.f32 %v343, 1.0
        %v345 = vmax.f32 %v344, 0.0
        %v346 = vmul.f32 %v338, %v345
        %v347 = vstv %s329
        %v348 = vadd.f32 %v316, %v347
        %v349 = vsub.f32 %v348, %v346
        %v350 = vrcp.pop %v349
        %v351 = vmul.f32 %v346, %v350
        %v352 = vstv %s331
        %v353 = vmul.f32 %v351, %v352
        %v354 = vsel %vm319, -1.0, %v353
        %s355 = smul.u32 %s24, 5
        %s356 = sld [smem:[#allocation4 + %s355]]
        %v357 = vstv %s356
        %vm358 = vcmp.ge.f32.partialorder %v354, %v357
        %vm359 = vcmp.gt.f32.partialorder %v354, -1e+30
        %v360 = vsel %vm359, %v354, -1e+30
        %s361 = sadd.s32 %s355, 1
        %s362 = smul.u32 %s361, 10
        %s363 = sld [smem:[#allocation2 + %s362]]
        %s364 = sadd.s32 %s362, 1
        %s365 = sld [smem:[#allocation2 + %s364]]
        %s366 = sadd.s32 %s362, 2
        %s367 = sld [smem:[#allocation2 + %s366]]
        %s368 = sadd.s32 %s362, 3
        %s369 = sld [smem:[#allocation2 + %s368]]
        %s370 = sadd.s32 %s362, 4
        %s371 = sld [smem:[#allocation2 + %s370]]
        %s372 = sadd.s32 %s362, 5
        %s373 = sld [smem:[#allocation2 + %s372]]
        %v374 = vstv %s367
        %v375 = vmin.f32 %v309, %v374
        %v376 = vstv %s363
        %v377 = vmax.f32 %v305, %v376
        %v378 = vsub.f32 %v375, %v377
        %v379 = vadd.f32 %v378, 1.0
        %v380 = vmax.f32 %v379, 0.0
        %v381 = vstv %s369
        %v382 = vmin.f32 %v311, %v381
        %v383 = vstv %s365
        %v384 = vmax.f32 %v307, %v383
        %v385 = vsub.f32 %v382, %v384
        %v386 = vadd.f32 %v385, 1.0
        %v387 = vmax.f32 %v386, 0.0
        %v388 = vmul.f32 %v380, %v387
        %v389 = vstv %s371
        %v390 = vadd.f32 %v316, %v389
        %v391 = vsub.f32 %v390, %v388
        %v392 = vrcp.pop %v391
        %v393 = vmul.f32 %v388, %v392
        %v394 = vstv %s373
        %v395 = vmul.f32 %v393, %v394
        %v396 = vsel %vm319, -1.0, %v395
        %s397 = sld [smem:[#allocation4 + %s361]]
        %v398 = vstv %s397
        %vm399 = vcmp.ge.f32.partialorder %v396, %v398
        %vm400 = vmor %vm358, %vm399
        %vm401 = vcmp.gt.f32.partialorder %v396, %v360
        %v402 = vsel %vm401, %v396, %v360
        %v403 = vsel %vm401, 1, 0
        %s404 = sadd.s32 %s355, 2
        %s405 = smul.u32 %s404, 10
        %s406 = sld [smem:[#allocation2 + %s405]]
        %s407 = sadd.s32 %s405, 1
        %s408 = sld [smem:[#allocation2 + %s407]]
        %s409 = sadd.s32 %s405, 2
        %s410 = sld [smem:[#allocation2 + %s409]]
        %s411 = sadd.s32 %s405, 3
        %s412 = sld [smem:[#allocation2 + %s411]]
        %s413 = sadd.s32 %s405, 4
        %s414 = sld [smem:[#allocation2 + %s413]]
        %s415 = sadd.s32 %s405, 5
        %s416 = sld [smem:[#allocation2 + %s415]]
        %v417 = vstv %s410
        %v418 = vmin.f32 %v309, %v417
        %v419 = vstv %s406
        %v420 = vmax.f32 %v305, %v419
        %v421 = vsub.f32 %v418, %v420
        %v422 = vadd.f32 %v421, 1.0
        %v423 = vmax.f32 %v422, 0.0
        %v424 = vstv %s412
        %v425 = vmin.f32 %v311, %v424
        %v426 = vstv %s408
        %v427 = vmax.f32 %v307, %v426
        %v428 = vsub.f32 %v425, %v427
        %v429 = vadd.f32 %v428, 1.0
        %v430 = vmax.f32 %v429, 0.0
        %v431 = vmul.f32 %v423, %v430
        %v432 = vstv %s414
        %v433 = vadd.f32 %v316, %v432
        %v434 = vsub.f32 %v433, %v431
        %v435 = vrcp.pop %v434
        %v436 = vmul.f32 %v431, %v435
        %v437 = vstv %s416
        %v438 = vmul.f32 %v436, %v437
        %v439 = vsel %vm319, -1.0, %v438
        %s440 = sld [smem:[#allocation4 + %s404]]
        %v441 = vstv %s440
        %vm442 = vcmp.ge.f32.partialorder %v439, %v441
        %vm443 = vmor %vm400, %vm442
        %vm444 = vcmp.gt.f32.partialorder %v439, %v402
        %v445 = vsel %vm444, %v439, %v402
        %v446 = vsel %vm444, 2, %v403
        %s447 = sadd.s32 %s355, 3
        %s448 = smul.u32 %s447, 10
        %s449 = sld [smem:[#allocation2 + %s448]]
        %s450 = sadd.s32 %s448, 1
        %s451 = sld [smem:[#allocation2 + %s450]]
        %s452 = sadd.s32 %s448, 2
        %s453 = sld [smem:[#allocation2 + %s452]]
        %s454 = sadd.s32 %s448, 3
        %s455 = sld [smem:[#allocation2 + %s454]]
        %s456 = sadd.s32 %s448, 4
        %s457 = sld [smem:[#allocation2 + %s456]]
        %s458 = sadd.s32 %s448, 5
        %s459 = sld [smem:[#allocation2 + %s458]]
        %v460 = vstv %s453
        %v461 = vmin.f32 %v309, %v460
        %v462 = vstv %s449
        %v463 = vmax.f32 %v305, %v462
        %v464 = vsub.f32 %v461, %v463
        %v465 = vadd.f32 %v464, 1.0
        %v466 = vmax.f32 %v465, 0.0
        %v467 = vstv %s455
        %v468 = vmin.f32 %v311, %v467
        %v469 = vstv %s451
        %v470 = vmax.f32 %v307, %v469
        %v471 = vsub.f32 %v468, %v470
        %v472 = vadd.f32 %v471, 1.0
        %v473 = vmax.f32 %v472, 0.0
        %v474 = vmul.f32 %v466, %v473
        %v475 = vstv %s457
        %v476 = vadd.f32 %v316, %v475
        %v477 = vsub.f32 %v476, %v474
        %v478 = vrcp.pop %v477
        %v479 = vmul.f32 %v474, %v478
        %v480 = vstv %s459
        %v481 = vmul.f32 %v479, %v480
        %v482 = vsel %vm319, -1.0, %v481
        %s483 = sld [smem:[#allocation4 + %s447]]
        %v484 = vstv %s483
        %vm485 = vcmp.ge.f32.partialorder %v482, %v484
        %vm486 = vmor %vm443, %vm485
        %vm487 = vcmp.gt.f32.partialorder %v482, %v445
        %v488 = vsel %vm487, %v482, %v445
        %v489 = vsel %vm487, 3, %v446
        %s490 = sadd.s32 %s355, 4
        %s491 = smul.u32 %s490, 10
        %s492 = sld [smem:[#allocation2 + %s491]]
        %s493 = sadd.s32 %s491, 1
        %s494 = sld [smem:[#allocation2 + %s493]]
        %s495 = sadd.s32 %s491, 2
        %s496 = sld [smem:[#allocation2 + %s495]]
        %s497 = sadd.s32 %s491, 3
        %s498 = sld [smem:[#allocation2 + %s497]]
        %s499 = sadd.s32 %s491, 4
        %s500 = sld [smem:[#allocation2 + %s499]]
        %s501 = sadd.s32 %s491, 5
        %s502 = sld [smem:[#allocation2 + %s501]]
        %v503 = vstv %s496
        %v504 = vmin.f32 %v309, %v503
        %v505 = vstv %s492
        %v506 = vmax.f32 %v305, %v505
        %v507 = vsub.f32 %v504, %v506
        %v508 = vadd.f32 %v507, 1.0
        %v509 = vmax.f32 %v508, 0.0
        %v510 = vstv %s498
        %v511 = vmin.f32 %v311, %v510
        %v512 = vstv %s494
        %v513 = vmax.f32 %v307, %v512
        %v514 = vsub.f32 %v511, %v513
        %v515 = vadd.f32 %v514, 1.0
        %v516 = vmax.f32 %v515, 0.0
        %v517 = vmul.f32 %v509, %v516
        %v518 = vstv %s500
        %v519 = vadd.f32 %v316, %v518
        %v520 = vsub.f32 %v519, %v517
        %v521 = vrcp.pop %v520
        %v522 = vmul.f32 %v517, %v521
        %v523 = vstv %s502
        %v524 = vmul.f32 %v522, %v523
        %v525 = vsel %vm319, -1.0, %v524
        %s526 = sld [smem:[#allocation4 + %s490]]
        %v527 = vstv %s526
        %vm528 = vcmp.ge.f32.partialorder %v525, %v527
        %vm529 = vmor %vm486, %vm528
        %vm530 = vcmp.gt.f32.partialorder %v525, %v488
        %v531 = vsel %vm530, %v525, %v488
        %v532 = vsel %vm530, 4, %v489
        %v533 = vld [vmem:[%s289] sm:$0xff]
        %vm534 = vcmp.gt.f32.partialorder %v533, 0.0
        %vm535 = vcmp.lt.f32.partialorder %v531, 0.3
        %v536 = vsel %vm535, 0.0, -1.0
        %v537 = vsel %vm529, 1.0, %v536
        %vm538 = vcmp.ge.f32.partialorder %v531, 0.7
        %v539 = vsel %vm538, 1.0, %v537
        %v540 = vsel %vm534, %v539, -1.0
        %541 = vst [vmem:[%s296] sm:$0xff] %v540
        %vm542 = vcmp.eq.s32.totalorder %v532, 0
        %s543 = sadd.s32 %s320, 6
        %s544 = sld [smem:[#allocation2 + %s543]]
        %v545 = vstv %s544
        %v546 = vsel %vm542, %v545, 0.0
        %s547 = sadd.s32 %s320, 7
        %s548 = sld [smem:[#allocation2 + %s547]]
        %v549 = vstv %s548
        %v550 = vsel %vm542, %v549, 0.0
        %s551 = sadd.s32 %s320, 8
        %s552 = sld [smem:[#allocation2 + %s551]]
        %v553 = vstv %s552
        %v554 = vsel %vm542, %v553, 1.0
        %s555 = sadd.s32 %s320, 9
        %s556 = sld [smem:[#allocation2 + %s555]]
        %v557 = vstv %s556
        %v558 = vsel %vm542, %v557, 1.0
        %vm559 = vcmp.eq.s32.totalorder %v532, 1
        %s560 = sadd.s32 %s362, 6
        %s561 = sld [smem:[#allocation2 + %s560]]
        %v562 = vstv %s561
        %v563 = vsel %vm559, %v562, %v546
        %s564 = sadd.s32 %s362, 7
        %s565 = sld [smem:[#allocation2 + %s564]]
        %v566 = vstv %s565
        %v567 = vsel %vm559, %v566, %v550
        %s568 = sadd.s32 %s362, 8
        %s569 = sld [smem:[#allocation2 + %s568]]
        %v570 = vstv %s569
        %v571 = vsel %vm559, %v570, %v554
        %s572 = sadd.s32 %s362, 9
        %s573 = sld [smem:[#allocation2 + %s572]]
        %v574 = vstv %s573
        %v575 = vsel %vm559, %v574, %v558
        %vm576 = vcmp.eq.s32.totalorder %v532, 2
        %s577 = sadd.s32 %s405, 6
        %s578 = sld [smem:[#allocation2 + %s577]]
        %v579 = vstv %s578
        %v580 = vsel %vm576, %v579, %v563
        %s581 = sadd.s32 %s405, 7
        %s582 = sld [smem:[#allocation2 + %s581]]
        %v583 = vstv %s582
        %v584 = vsel %vm576, %v583, %v567
        %s585 = sadd.s32 %s405, 8
        %s586 = sld [smem:[#allocation2 + %s585]]
        %v587 = vstv %s586
        %v588 = vsel %vm576, %v587, %v571
        %s589 = sadd.s32 %s405, 9
        %s590 = sld [smem:[#allocation2 + %s589]]
        %v591 = vstv %s590
        %v592 = vsel %vm576, %v591, %v575
        %vm593 = vcmp.eq.s32.totalorder %v532, 3
        %s594 = sadd.s32 %s448, 6
        %s595 = sld [smem:[#allocation2 + %s594]]
        %v596 = vstv %s595
        %v597 = vsel %vm593, %v596, %v580
        %s598 = sadd.s32 %s448, 7
        %s599 = sld [smem:[#allocation2 + %s598]]
        %v600 = vstv %s599
        %v601 = vsel %vm593, %v600, %v584
        %s602 = sadd.s32 %s448, 8
        %s603 = sld [smem:[#allocation2 + %s602]]
        %v604 = vstv %s603
        %v605 = vsel %vm593, %v604, %v588
        %s606 = sadd.s32 %s448, 9
        %s607 = sld [smem:[#allocation2 + %s606]]
        %v608 = vstv %s607
        %v609 = vsel %vm593, %v608, %v592
        %vm610 = vcmp.eq.s32.totalorder %v532, 4
        %s611 = sadd.s32 %s491, 6
        %s612 = sld [smem:[#allocation2 + %s611]]
        %v613 = vstv %s612
        %v614 = vsel %vm610, %v613, %v597
        %s615 = sadd.s32 %s491, 7
        %s616 = sld [smem:[#allocation2 + %s615]]
        %v617 = vstv %s616
        %v618 = vsel %vm610, %v617, %v601
        %s619 = sadd.s32 %s491, 8
        %s620 = sld [smem:[#allocation2 + %s619]]
        %v621 = vstv %s620
        %v622 = vsel %vm610, %v621, %v605
        %s623 = sadd.s32 %s491, 9
        %s624 = sld [smem:[#allocation2 + %s623]]
        %v625 = vstv %s624
        %v626 = vsel %vm610, %v625, %v609
        %v627 = vmul.f32 %v313, 0.5
        %v628 = vadd.f32 %v305, %v627
        %v629 = vmul.f32 %v315, 0.5
        %v630 = vadd.f32 %v307, %v629
        %v631 = vsub.f32 %v614, %v628
        %v632 = vrcp.pop %v313
        %v633 = vmul.f32 %v631, %v632
        %v634 = vsub.f32 %v618, %v630
        %v635 = vrcp.pop %v315
        %v636 = vmul.f32 %v634, %v635
        %v637 = vmul.f32 %v622, %v632
        %v638 = vlog2.pop %v637
        %v639 = vmul.f32 %v638, 0.6931472
        %v640 = vmul.f32 %v626, %v635
        %v641 = vlog2.pop %v640
        %v642 = vmul.f32 %v641, 0.6931472
        %v643 = vsel %vm534, %v633, 0.0
        %644 = vst [vmem:[%s304] sm:$0xff] %v643
        %v645 = vsel %vm534, %v636, 0.0
        %s646 = scalar_lea.vmem %s304, 8
        %647 = vst [vmem:[%s646] sm:$0xff] %v645
        %v648 = vsel %vm534, %v639, 0.0
        %s649 = scalar_lea.vmem %s304, 16
        %650 = vst [vmem:[%s649] sm:$0xff] %v648
        %v651 = vsel %vm534, %v642, 0.0
        %s652 = scalar_lea.vmem %s304, 24
        %653 = vst [vmem:[%s652] sm:$0xff] %v651
        %p654 = scmp.lt.s32.totalorder %s24, 1
        %s655 = scalar_select %p654, %s24, 1
        %p656 = scmp.lt.s32.totalorder %s23, 0
        %s657 = scalar_select %p656, %s23, 0
        %s658 = sadd.s32 %s657, %s655
        %s659 = smul.addr %s658, 8
        %s660 = scalar_lea.vmem %s4, %s659
        %p661 = scmp.lt.s32.totalorder %s24, 1
        %s662 = scalar_select %p661, %s24, 1
        %p663 = scmp.lt.s32.totalorder %s23, 0
        %s664 = scalar_select %p663, %s23, 0
        %s665 = smul.addr %s662, 4
        %s666 = sadd.s32 %s664, %s665
        %s667 = smul.addr %s666, 8
        %s668 = scalar_lea.vmem %s5, %s667
        // Predicated region
        $region45: #{_anchor_target_device.3} parent=35 // pred_check
          %p669 = pneg %p145
        $region46: #{_anchor_target_device.3} parent=35 // pred_check_branch
          %671 = sbr.rel (%p669) target = $region48
        $region47: #{_anchor_target_device.3} parent=35 // pred_region
          _
        $region48: #{_anchor_target_device.3} parent=35 // pred_fallthru
          _
        // Predicated region
        $region49: #{_anchor_target_device.3} parent=35 // pred_check
          %p672 = pneg %p173
        $region50: #{_anchor_target_device.3} parent=35 // pred_check_branch
          %674 = sbr.rel (%p672) target = $region52
        $region51: #{_anchor_target_device.3} parent=35 // pred_region
          _
        $region52: #{_anchor_target_device.3} parent=35 // pred_fallthru
          _
      $region36: #{_anchor_target_device.3} parent=5 // pred_fallthru
        _
      %p675 = scmp.le.s32.totalorder 2, %s14
      // Predicated region
      $region53: #{_anchor_target_device.3} parent=5 // pred_check
        %p676 = pneg %p675
      $region54: #{_anchor_target_device.3} parent=5 // pred_check_branch
        %678 = sbr.rel (%p676) target = $region56
      $region55: #{_anchor_target_device.3} parent=5 // pred_region
        %s679 = ssub.s32 %s14, 2
        // Predicated region
        $region57: #{_anchor_target_device.3} parent=55 // pred_check
          %p680 = pneg %p151
        $region58: #{_anchor_target_device.3} parent=55 // pred_check_branch
          %682 = sbr.rel (%p680) target = $region60
        $region59: #{_anchor_target_device.3} parent=55 // pred_region
          %p683 = scmp.lt.s32.totalorder %s26, 1
          %s684 = scalar_select %p683, %s26, 1
          %p685 = scmp.lt.s32.totalorder %s25, 0
          %s686 = scalar_select %p685, %s25, 0
          %s687 = sadd.s32 %s686, %s684
          %s688 = smul.addr %s687, 8
          %s689 = scalar_lea.vmem %s4, %s688
        $region60: #{_anchor_target_device.3} parent=55 // pred_fallthru
          _
        // Predicated region
        $region61: #{_anchor_target_device.3} parent=55 // pred_check
          %p690 = pneg %p179
        $region62: #{_anchor_target_device.3} parent=55 // pred_check_branch
          %692 = sbr.rel (%p690) target = $region64
        $region63: #{_anchor_target_device.3} parent=55 // pred_region
          %p693 = scmp.lt.s32.totalorder %s26, 1
          %s694 = scalar_select %p693, %s26, 1
          %p695 = scmp.lt.s32.totalorder %s25, 0
          %s696 = scalar_select %p695, %s25, 0
          %s697 = smul.addr %s694, 4
          %s698 = sadd.s32 %s696, %s697
          %s699 = smul.addr %s698, 8
          %s700 = scalar_lea.vmem %s5, %s699
        $region64: #{_anchor_target_device.3} parent=55 // pred_fallthru
          _
      $region56: #{_anchor_target_device.3} parent=5 // pred_fallthru
        _
    $region6: #{_anchor_target_device.3} parent=1 // loop_footer
      %s18 = sadd.s32 1, %s14
    $region7: #{_anchor_target_device.3} parent=1 // loop_footer_branch
      %13 = sbr.rel target = $region3
    $region8: #{_anchor_target_device.3} parent=1 // loop_exit
      _
    %701 = vsyncpa [#allocation3], 1
    %s702 = scalar_lea.sflag [#allocation3], 1
    %703 = vsyncpa %s702, 1
    %704 = vsyncpa [#allocation5], 1

// kernel: _anchor_target_device.2
$region0: #{_anchor_target_device.2}
  #allocation0 [shape = 'u32[]', space=smem, size = 0x4, offset = 0x4, fixed_abs, tag = 'smem constant byte address 0x4 - core index']
  #allocation1 [shape = 'u32[144,128]{1,0:T(1,128)}', space=vmem, size = 0x12000, scoped, tag = 'internal scratch']
  %s0 = inlined_call_operand.vmem [shape: f32[100], index: 0, kind: input, shape index: {}]
  %s1 = inlined_call_operand.vmem [shape: f32[4,8,128], index: 1, kind: input, shape index: {}]
  %s2 = inlined_call_operand.vmem [shape: f32[8,128], index: 2, kind: input, shape index: {}]
  %s3 = inlined_call_operand.vmem [shape: f32[2,1,1,128], index: 3, kind: output, shape index: {}]
  %s4 = sld [smem:[#allocation0]]
  $region49: #{_anchor_target_device.2} parent=0
    _
  %s6 = ssub.s32 1, %s4
  %s7 = scalar_select 0, %s6, %s4
  $region1: #{_anchor_target_device.2} parent=0
    #allocation2 [shape = 'u8[512]{0}', space=smem, size = 0x200, scoped, tag = 'input window, operand 0, single buffered']
    #allocation3 [shape = 's32[2]{0}', space=sflag, size = 0x8, scoped, tag = 'scoped memory for _anchor_target_device.2']
    %8 = vsyncpa [#allocation3], 0
    loop: start=0, step=1, limit=4
    $region2: #{_anchor_target_device.2} parent=1 // loop_pre_header
      _
    $region3: #{_anchor_target_device.2} parent=1 // loop_header
      %s10 = sphi 0, %s14
      %p11 = scmp.ge.s32.totalorder %s10, 4
      %s17 = sphi 0, %s29
      %s18 = sphi 0, %s25
      %s19 = sphi 0, %s17
      %s20 = sphi 0, %s18
      %s21 = sphi 0, %s19
      %s22 = sphi 0, %s20
      %s30 = sphi 0, %s30
      %s32 = sphi 0, %s30
      %s33 = sphi 0, %s32
      %s47 = sphi 0, %s33
      %s53 = sphi 0, %s55
      %s56 = sphi 0, %s53
      %s57 = sphi 0, %s56
      %s73 = sphi 0, %s57
      %s79 = sphi 0, %s81
      %s82 = sphi 0, %s79
      %s83 = sphi 0, %s82
      %s99 = sphi 0, %s83
      %s107 = sphi 0, %s109
      %s110 = sphi 0, %s107
      %s111 = sphi 0, %s110
      %s127 = sphi 0, %s111
    $region4: #{_anchor_target_device.2} parent=1 // loop_header_branch
      %13 = sbr.rel (%p11) target = $region8
    $region5: #{_anchor_target_device.2} parent=1 // loop_body
      %s15 = ssub.s32 %s10, 1
      %s16 = ssub.s32 %s10, 2
      %s23 = sadd.s32 1, %s18
      %p24 = scmp.ge.s32.totalorder %s23, 2
      %s25 = scalar_select %p24, 0, %s23
      %s26 = sadd.s32 1, %s17
      %s27 = scalar_select %p24, %s26, %s17
      %p28 = scmp.ge.s32.totalorder %s27, 1
      %s29 = scalar_select %p28, 0, %s27
      %s31 = sadd.s32 %s30, 1
      %p34 = scmp.eq.s32.totalorder %s10, 1
      %p35 = scmp.ne.s32.totalorder %s30, %s32
      %p36 = scmp.eq.s32.totalorder %s10, 0
      %p37 = por %p35, %p36
      %p38 = scmp.ne.s32.totalorder %s30, %s32
      %p39 = scmp.eq.s32.totalorder %s15, 1
      %p40 = por %p38, %p39
      %p41 = scmp.ne.s32.totalorder %s32, %s33
      %p42 = scmp.eq.s32.totalorder %s15, 0
      %p43 = por %p41, %p42
      %p44 = scmp.ne.s32.totalorder %s32, %s33
      %p45 = scmp.eq.s32.totalorder %s16, 1
      %p46 = por %p44, %p45
      %p48 = scmp.ne.s32.totalorder %s33, %s47
      %p49 = scmp.eq.s32.totalorder %s16, 0
      %p50 = por %p48, %p49
      %s51 = ssub.s32 %s17, %s29
      %p52 = scmp.eq.s32.totalorder %s51, 0
      %s54 = sadd.s32 %s53, 1
      %s55 = scalar_select %p52, %s53, %s54
      %p58 = pneg %p52
      %p59 = scmp.eq.s32.totalorder %s10, 1
      %p60 = por %p58, %p59
      %p61 = scmp.ne.s32.totalorder %s53, %s56
      %p62 = scmp.eq.s32.totalorder %s10, 0
      %p63 = por %p61, %p62
      %p64 = scmp.ne.s32.totalorder %s53, %s56
      %p65 = scmp.eq.s32.totalorder %s15, 1
      %p66 = por %p64, %p65
      %p67 = scmp.ne.s32.totalorder %s56, %s57
      %p68 = scmp.eq.s32.totalorder %s15, 0
      %p69 = por %p67, %p68
      %p70 = scmp.ne.s32.totalorder %s56, %s57
      %p71 = scmp.eq.s32.totalorder %s16, 1
      %p72 = por %p70, %p71
      %p74 = scmp.ne.s32.totalorder %s57, %s73
      %p75 = scmp.eq.s32.totalorder %s16, 0
      %p76 = por %p74, %p75
      %s77 = ssub.s32 %s17, %s29
      %p78 = scmp.eq.s32.totalorder %s77, 0
      %s80 = sadd.s32 %s79, 1
      %s81 = scalar_select %p78, %s79, %s80
      %p84 = pneg %p78
      %p85 = scmp.eq.s32.totalorder %s10, 1
      %p86 = por %p84, %p85
      %p87 = scmp.ne.s32.totalorder %s79, %s82
      %p88 = scmp.eq.s32.totalorder %s10, 0
      %p89 = por %p87, %p88
      %p90 = scmp.ne.s32.totalorder %s79, %s82
      %p91 = scmp.eq.s32.totalorder %s15, 1
      %p92 = por %p90, %p91
      %p93 = scmp.ne.s32.totalorder %s82, %s83
      %p94 = scmp.eq.s32.totalorder %s15, 0
      %p95 = por %p93, %p94
      %p96 = scmp.ne.s32.totalorder %s82, %s83
      %p97 = scmp.eq.s32.totalorder %s16, 1
      %p98 = por %p96, %p97
      %p100 = scmp.ne.s32.totalorder %s83, %s99
      %p101 = scmp.eq.s32.totalorder %s16, 0
      %p102 = por %p100, %p101
      %s103 = ssub.s32 %s18, %s25
      %s104 = ssub.s32 %s17, %s29
      %s105 = sor.u32 %s103, %s104
      %p106 = scmp.eq.s32.totalorder %s105, 0
      %s108 = sadd.s32 %s107, 1
      %s109 = scalar_select %p106, %s107, %s108
      %p112 = pneg %p106
      %p113 = scmp.eq.s32.totalorder %s10, 1
      %p114 = por %p112, %p113
      %p115 = scmp.ne.s32.totalorder %s107, %s110
      %p116 = scmp.eq.s32.totalorder %s10, 0
      %p117 = por %p115, %p116
      %p118 = scmp.ne.s32.totalorder %s107, %s110
      %p119 = scmp.eq.s32.totalorder %s15, 1
      %p120 = por %p118, %p119
      %p121 = scmp.ne.s32.totalorder %s110, %s111
      %p122 = scmp.eq.s32.totalorder %s15, 0
      %p123 = por %p121, %p122
      %p124 = scmp.ne.s32.totalorder %s110, %s111
      %p125 = scmp.eq.s32.totalorder %s16, 1
      %p126 = por %p124, %p125
      %p128 = scmp.ne.s32.totalorder %s111, %s127
      %p129 = scmp.eq.s32.totalorder %s16, 0
      %p130 = por %p128, %p129
      %p131 = scmp.le.s32.totalorder 1, %s10
      %p132 = scmp.lt.s32.totalorder %s10, 3
      %p133 = pnand %p131, %p132
      %p134 = pneg %p133
      // Predicated region
      $region9: #{_anchor_target_device.2} parent=5 // pred_check
        _
      $region10: #{_anchor_target_device.2} parent=5 // pred_check_branch
        %136 = sbr.rel (%p133) target = $region12
      $region11: #{_anchor_target_device.2} parent=5 // pred_region
        %s137 = ssub.s32 %s10, 1
        // Predicated region
        $region13: #{_anchor_target_device.2} parent=11 // pred_check
          %p138 = pneg %p43
        $region14: #{_anchor_target_device.2} parent=11 // pred_check_branch
          %140 = sbr.rel (%p138) target = $region16
        $region15: #{_anchor_target_device.2} parent=11 // pred_region
          %s142 = ssub.s32 16, 16
          %143 = vsyncadd [#allocation3], %s142
          %s145 = sshll.u32 %s0, 4
          %s146 = int_to_ptr.vmem [resolvable:$true] %s145
          %148 = dma.vmem_to_smem %s146, 16, [#allocation2], [#allocation3]
        $region16: #{_anchor_target_device.2} parent=11 // pred_fallthru
          _
        // Predicated region
        $region17: #{_anchor_target_device.2} parent=11 // pred_check
          %p149 = pneg %p69
        $region18: #{_anchor_target_device.2} parent=11 // pred_check_branch
          %151 = sbr.rel (%p149) target = $region20
        $region19: #{_anchor_target_device.2} parent=11 // pred_region
          %p152 = scmp.lt.s32.totalorder %s19, 0
          %s153 = scalar_select %p152, %s19, 0
          %s154 = smul.addr %s153, 8
          %s155 = scalar_lea.vmem %s1, %s154
        $region20: #{_anchor_target_device.2} parent=11 // pred_fallthru
          _
        // Predicated region
        $region21: #{_anchor_target_device.2} parent=11 // pred_check
          %p156 = pneg %p95
        $region22: #{_anchor_target_device.2} parent=11 // pred_check_branch
          %158 = sbr.rel (%p156) target = $region24
        $region23: #{_anchor_target_device.2} parent=11 // pred_region
          %p159 = scmp.lt.s32.totalorder %s19, 0
          %s160 = scalar_select %p159, %s19, 0
          %s161 = smul.addr %s160, 8
          %s162 = scalar_lea.vmem %s2, %s161
        $region24: #{_anchor_target_device.2} parent=11 // pred_fallthru
          _
      $region12: #{_anchor_target_device.2} parent=5 // pred_fallthru
        _
      %p163 = scmp.lt.s32.totalorder %s10, 2
      // Predicated region
      $region25: #{_anchor_target_device.2} parent=5 // pred_check
        %p164 = pneg %p163
      $region26: #{_anchor_target_device.2} parent=5 // pred_check_branch
        %166 = sbr.rel (%p164) target = $region28
      $region27: #{_anchor_target_device.2} parent=5 // pred_region
        _
      $region28: #{_anchor_target_device.2} parent=5 // pred_fallthru
        _
      %p167 = scmp.le.s32.totalorder 1, %s10
      %p168 = scmp.lt.s32.totalorder %s10, 3
      %p169 = pnand %p167, %p168
      %p170 = pneg %p169
      // Predicated region
      $region29: #{_anchor_target_device.2} parent=5 // pred_check
        _
      $region30: #{_anchor_target_device.2} parent=5 // pred_check_branch
        %172 = sbr.rel (%p169) target = $region32
      $region31: #{_anchor_target_device.2} parent=5 // pred_region
        %s173 = ssub.s32 %s10, 1
        // Predicated region
        $region33: #{_anchor_target_device.2} parent=31 // pred_check
          %p174 = pneg %p43
        $region34: #{_anchor_target_device.2} parent=31 // pred_check_branch
          %176 = sbr.rel (%p174) target = $region36
        $region35: #{_anchor_target_device.2} parent=31 // pred_region
          %177 = dma.done [#allocation3], 16
        $region36: #{_anchor_target_device.2} parent=31 // pred_fallthru
          _
        %178 = sfence
        %p179 = pneg %p43
        %p180 = pneg %p40
        %p181 = scmp.lt.s32.totalorder %s19, 0
        %s182 = scalar_select %p181, %s19, 0
        %s183 = smul.addr %s182, 8
        %s184 = scalar_lea.vmem %s1, %s183
        %p185 = pneg %p69
        %p186 = pneg %p66
        %p187 = scmp.lt.s32.totalorder %s19, 0
        %s188 = scalar_select %p187, %s19, 0
        %s189 = smul.addr %s188, 8
        %s190 = scalar_lea.vmem %s2, %s189
        %p191 = pneg %p95
        %p192 = pneg %p92
        %p193 = pneg %p123
        %p194 = pneg %p120
        %p195 = scmp.lt.s32.totalorder %s20, 1
        %s196 = scalar_select %p195, %s20, 1
        %p197 = scmp.lt.s32.totalorder %s19, 0
        %s198 = scalar_select %p197, %s19, 0
        %s199 = sadd.s32 %s198, %s196
        %s200 = scalar_lea.vmem %s3, %s199
        %p201 = scmp.lt.s32.totalorder %s19, 0
        %s202 = scalar_select %p201, %s19, 0
        %s203 = smul.addr %s202, 8
        %s204 = scalar_lea.vmem %s1, %s203
        %p205 = scmp.lt.s32.totalorder %s19, 0
        %s206 = scalar_select %p205, %s19, 0
        %s207 = smul.addr %s206, 8
        %s208 = scalar_lea.vmem %s2, %s207
        %p209 = scmp.lt.s32.totalorder %s20, 1
        %s210 = scalar_select %p209, %s20, 1
        %p211 = scmp.lt.s32.totalorder %s19, 0
        %s212 = scalar_select %p211, %s19, 0
        %s213 = sadd.s32 %s212, %s210
        %s214 = scalar_lea.vmem %s3, %s213
        %v215 = vld [vmem:[%s204] sm:$0xff]
        %s216 = scalar_lea.vmem %s204, 8
        %v217 = vld [vmem:[%s216] sm:$0xff]
        %s218 = scalar_lea.vmem %s204, 16
        %v219 = vld [vmem:[%s218] sm:$0xff]
        %s220 = scalar_lea.vmem %s204, 24
        %v221 = vld [vmem:[%s220] sm:$0xff]
        %v222 = vsub.f32 %v219, %v215
        %v223 = vadd.f32 %v222, 1.0
        %v224 = vsub.f32 %v221, %v217
        %v225 = vadd.f32 %v224, 1.0
        %v226 = vmul.f32 %v223, %v225
        %vm227 = vcmp.eq.f32.partialorder %v223, 1.0
        %vm228 = vcmp.eq.f32.partialorder %v225, 1.0
        %vm229 = vmand %vm227, %vm228
        %v230 = vld [vmem:[%s208] sm:$0xff]
        %vm231 = vcmp.gt.f32.partialorder %v230, 0.0
        %v232 = vsel %vm231, 0.0, -1e+30
        %v233 = vlaneseq
        %v234 = vand.u32 %v233, 127
        %s235 = smul.u32 %s20, 50
        %s236 = sld [smem:[#allocation2 + %s235]]
        %s237 = sadd.s32 %s235, 1
        %s238 = sld [smem:[#allocation2 + %s237]]
        %s239 = sadd.s32 %s235, 2
        %s240 = sld [smem:[#allocation2 + %s239]]
        %s241 = sadd.s32 %s235, 3
        %s242 = sld [smem:[#allocation2 + %s241]]
        %s243 = sadd.s32 %s235, 4
        %s244 = sld [smem:[#allocation2 + %s243]]
        %s245 = sadd.s32 %s235, 5
        %s246 = sld [smem:[#allocation2 + %s245]]
        %v247 = vstv %s240
        %v248 = vmin.f32 %v219, %v247
        %v249 = vstv %s236
        %v250 = vmax.f32 %v215, %v249
        %v251 = vsub.f32 %v248, %v250
        %v252 = vadd.f32 %v251, 1.0
        %v253 = vmax.f32 %v252, 0.0
        %v254 = vstv %s242
        %v255 = vmin.f32 %v221, %v254
        %v256 = vstv %s238
        %v257 = vmax.f32 %v217, %v256
        %v258 = vsub.f32 %v255, %v257
        %v259 = vadd.f32 %v258, 1.0
        %v260 = vmax.f32 %v259, 0.0
        %v261 = vmul.f32 %v253, %v260
        %v262 = vstv %s244
        %v263 = vadd.f32 %v226, %v262
        %v264 = vsub.f32 %v263, %v261
        %v265 = vrcp.pop %v264
        %v266 = vmul.f32 %v261, %v265
        %v267 = vstv %s246
        %v268 = vmul.f32 %v266, %v267
        %v269 = vsel %vm229, -1.0, %v268
        %v270 = vadd.f32 %v269, %v232
        %271 = vmax.xlane.f32.xlu0 %v270
        %v272 = vpop.xlane.xlu0 %271
        %v273 = vrot.slane %v272, 4
        %v274 = vmax.f32 %v272, %v273
        %v275 = vrot.slane %v274, 2
        %v276 = vmax.f32 %v274, %v275
        %v277 = vrot.slane %v276, 1
        %v278 = vmax.f32 %v276, %v277
        %s279 = vtos %v278
        %vm280 = vcmp.eq.s32.totalorder %v234, 0
        %v281 = vstv %s279
        %v282 = vsel %vm280, %v281, -1e+30
        %s283 = smul.u32 %s20, 5
        %s284 = sadd.s32 %s283, 1
        %s285 = smul.u32 %s284, 10
        %s286 = sld [smem:[#allocation2 + %s285]]
        %s287 = sadd.s32 %s285, 1
        %s288 = sld [smem:[#allocation2 + %s287]]
        %s289 = sadd.s32 %s285, 2
        %s290 = sld [smem:[#allocation2 + %s289]]
        %s291 = sadd.s32 %s285, 3
        %s292 = sld [smem:[#allocation2 + %s291]]
        %s293 = sadd.s32 %s285, 4
        %s294 = sld [smem:[#allocation2 + %s293]]
        %s295 = sadd.s32 %s285, 5
        %s296 = sld [smem:[#allocation2 + %s295]]
        %v297 = vstv %s290
        %v298 = vmin.f32 %v219, %v297
        %v299 = vstv %s286
        %v300 = vmax.f32 %v215, %v299
        %v301 = vsub.f32 %v298, %v300
        %v302 = vadd.f32 %v301, 1.0
        %v303 = vmax.f32 %v302, 0.0
        %v304 = vstv %s292
        %v305 = vmin.f32 %v221, %v304
        %v306 = vstv %s288
        %v307 = vmax.f32 %v217, %v306
        %v308 = vsub.f32 %v305, %v307
        %v309 = vadd.f32 %v308, 1.0
        %v310 = vmax.f32 %v309, 0.0
        %v311 = vmul.f32 %v303, %v310
        %v312 = vstv %s294
        %v313 = vadd.f32 %v226, %v312
        %v314 = vsub.f32 %v313, %v311
        %v315 = vrcp.pop %v314
        %v316 = vmul.f32 %v311, %v315
        %v317 = vstv %s296
        %v318 = vmul.f32 %v316, %v317
        %v319 = vsel %vm229, -1.0, %v318
        %v320 = vadd.f32 %v319, %v232
        %321 = vmax.xlane.f32.xlu0 %v320
        %v322 = vpop.xlane.xlu0 %321
        %v323 = vrot.slane %v322, 4
        %v324 = vmax.f32 %v322, %v323
        %v325 = vrot.slane %v324, 2
        %v326 = vmax.f32 %v324, %v325
        %v327 = vrot.slane %v326, 1
        %v328 = vmax.f32 %v326, %v327
        %s329 = vtos %v328
        %vm330 = vcmp.eq.s32.totalorder %v234, 1
        %v331 = vstv %s329
        %v332 = vsel %vm330, %v331, %v282
        %s333 = sadd.s32 %s283, 2
        %s334 = smul.u32 %s333, 10
        %s335 = sld [smem:[#allocation2 + %s334]]
        %s336 = sadd.s32 %s334, 1
        %s337 = sld [smem:[#allocation2 + %s336]]
        %s338 = sadd.s32 %s334, 2
        %s339 = sld [smem:[#allocation2 + %s338]]
        %s340 = sadd.s32 %s334, 3
        %s341 = sld [smem:[#allocation2 + %s340]]
        %s342 = sadd.s32 %s334, 4
        %s343 = sld [smem:[#allocation2 + %s342]]
        %s344 = sadd.s32 %s334, 5
        %s345 = sld [smem:[#allocation2 + %s344]]
        %v346 = vstv %s339
        %v347 = vmin.f32 %v219, %v346
        %v348 = vstv %s335
        %v349 = vmax.f32 %v215, %v348
        %v350 = vsub.f32 %v347, %v349
        %v351 = vadd.f32 %v350, 1.0
        %v352 = vmax.f32 %v351, 0.0
        %v353 = vstv %s341
        %v354 = vmin.f32 %v221, %v353
        %v355 = vstv %s337
        %v356 = vmax.f32 %v217, %v355
        %v357 = vsub.f32 %v354, %v356
        %v358 = vadd.f32 %v357, 1.0
        %v359 = vmax.f32 %v358, 0.0
        %v360 = vmul.f32 %v352, %v359
        %v361 = vstv %s343
        %v362 = vadd.f32 %v226, %v361
        %v363 = vsub.f32 %v362, %v360
        %v364 = vrcp.pop %v363
        %v365 = vmul.f32 %v360, %v364
        %v366 = vstv %s345
        %v367 = vmul.f32 %v365, %v366
        %v368 = vsel %vm229, -1.0, %v367
        %v369 = vadd.f32 %v368, %v232
        %370 = vmax.xlane.f32.xlu0 %v369
        %v371 = vpop.xlane.xlu0 %370
        %v372 = vrot.slane %v371, 4
        %v373 = vmax.f32 %v371, %v372
        %v374 = vrot.slane %v373, 2
        %v375 = vmax.f32 %v373, %v374
        %v376 = vrot.slane %v375, 1
        %v377 = vmax.f32 %v375, %v376
        %s378 = vtos %v377
        %vm379 = vcmp.eq.s32.totalorder %v234, 2
        %v380 = vstv %s378
        %v381 = vsel %vm379, %v380, %v332
        %s382 = sadd.s32 %s283, 3
        %s383 = smul.u32 %s382, 10
        %s384 = sld [smem:[#allocation2 + %s383]]
        %s385 = sadd.s32 %s383, 1
        %s386 = sld [smem:[#allocation2 + %s385]]
        %s387 = sadd.s32 %s383, 2
        %s388 = sld [smem:[#allocation2 + %s387]]
        %s389 = sadd.s32 %s383, 3
        %s390 = sld [smem:[#allocation2 + %s389]]
        %s391 = sadd.s32 %s383, 4
        %s392 = sld [smem:[#allocation2 + %s391]]
        %s393 = sadd.s32 %s383, 5
        %s394 = sld [smem:[#allocation2 + %s393]]
        %v395 = vstv %s388
        %v396 = vmin.f32 %v219, %v395
        %v397 = vstv %s384
        %v398 = vmax.f32 %v215, %v397
        %v399 = vsub.f32 %v396, %v398
        %v400 = vadd.f32 %v399, 1.0
        %v401 = vmax.f32 %v400, 0.0
        %v402 = vstv %s390
        %v403 = vmin.f32 %v221, %v402
        %v404 = vstv %s386
        %v405 = vmax.f32 %v217, %v404
        %v406 = vsub.f32 %v403, %v405
        %v407 = vadd.f32 %v406, 1.0
        %v408 = vmax.f32 %v407, 0.0
        %v409 = vmul.f32 %v401, %v408
        %v410 = vstv %s392
        %v411 = vadd.f32 %v226, %v410
        %v412 = vsub.f32 %v411, %v409
        %v413 = vrcp.pop %v412
        %v414 = vmul.f32 %v409, %v413
        %v415 = vstv %s394
        %v416 = vmul.f32 %v414, %v415
        %v417 = vsel %vm229, -1.0, %v416
        %v418 = vadd.f32 %v417, %v232
        %419 = vmax.xlane.f32.xlu0 %v418
        %v420 = vpop.xlane.xlu0 %419
        %v421 = vrot.slane %v420, 4
        %v422 = vmax.f32 %v420, %v421
        %v423 = vrot.slane %v422, 2
        %v424 = vmax.f32 %v422, %v423
        %v425 = vrot.slane %v424, 1
        %v426 = vmax.f32 %v424, %v425
        %s427 = vtos %v426
        %vm428 = vcmp.eq.s32.totalorder %v234, 3
        %v429 = vstv %s427
        %v430 = vsel %vm428, %v429, %v381
        %s431 = sadd.s32 %s283, 4
        %s432 = smul.u32 %s431, 10
        %s433 = sld [smem:[#allocation2 + %s432]]
        %s434 = sadd.s32 %s432, 1
        %s435 = sld [smem:[#allocation2 + %s434]]
        %s436 = sadd.s32 %s432, 2
        %s437 = sld [smem:[#allocation2 + %s436]]
        %s438 = sadd.s32 %s432, 3
        %s439 = sld [smem:[#allocation2 + %s438]]
        %s440 = sadd.s32 %s432, 4
        %s441 = sld [smem:[#allocation2 + %s440]]
        %s442 = sadd.s32 %s432, 5
        %s443 = sld [smem:[#allocation2 + %s442]]
        %v444 = vstv %s437
        %v445 = vmin.f32 %v219, %v444
        %v446 = vstv %s433
        %v447 = vmax.f32 %v215, %v446
        %v448 = vsub.f32 %v445, %v447
        %v449 = vadd.f32 %v448, 1.0
        %v450 = vmax.f32 %v449, 0.0
        %v451 = vstv %s439
        %v452 = vmin.f32 %v221, %v451
        %v453 = vstv %s435
        %v454 = vmax.f32 %v217, %v453
        %v455 = vsub.f32 %v452, %v454
        %v456 = vadd.f32 %v455, 1.0
        %v457 = vmax.f32 %v456, 0.0
        %v458 = vmul.f32 %v450, %v457
        %v459 = vstv %s441
        %v460 = vadd.f32 %v226, %v459
        %v461 = vsub.f32 %v460, %v458
        %v462 = vrcp.pop %v461
        %v463 = vmul.f32 %v458, %v462
        %v464 = vstv %s443
        %v465 = vmul.f32 %v463, %v464
        %v466 = vsel %vm229, -1.0, %v465
        %v467 = vadd.f32 %v466, %v232
        %468 = vmax.xlane.f32.xlu0 %v467
        %v469 = vpop.xlane.xlu0 %468
        %v470 = vrot.slane %v469, 4
        %v471 = vmax.f32 %v469, %v470
        %v472 = vrot.slane %v471, 2
        %v473 = vmax.f32 %v471, %v472
        %v474 = vrot.slane %v473, 1
        %v475 = vmax.f32 %v473, %v474
        %s476 = vtos %v475
        %vm477 = vcmp.eq.s32.totalorder %v234, 4
        %v478 = vstv %s476
        %v479 = vsel %vm477, %v478, %v430
        %480 = vst [vmem:[%s214] sm:$0x1] %v479
        %p481 = scmp.lt.s32.totalorder %s20, 1
        %s482 = scalar_select %p481, %s20, 1
        %p483 = scmp.lt.s32.totalorder %s19, 0
        %s484 = scalar_select %p483, %s19, 0
        %s485 = sadd.s32 %s484, %s482
        %s486 = scalar_lea.vmem %s3, %s485
        // Predicated region
        $region37: #{_anchor_target_device.2} parent=31 // pred_check
          %p487 = pneg %p120
        $region38: #{_anchor_target_device.2} parent=31 // pred_check_branch
          %489 = sbr.rel (%p487) target = $region40
        $region39: #{_anchor_target_device.2} parent=31 // pred_region
          _
        $region40: #{_anchor_target_device.2} parent=31 // pred_fallthru
          _
      $region32: #{_anchor_target_device.2} parent=5 // pred_fallthru
        _
      %p490 = scmp.le.s32.totalorder 2, %s10
      // Predicated region
      $region41: #{_anchor_target_device.2} parent=5 // pred_check
        %p491 = pneg %p490
      $region42: #{_anchor_target_device.2} parent=5 // pred_check_branch
        %493 = sbr.rel (%p491) target = $region44
      $region43: #{_anchor_target_device.2} parent=5 // pred_region
        %s494 = ssub.s32 %s10, 2
        // Predicated region
        $region45: #{_anchor_target_device.2} parent=43 // pred_check
          %p495 = pneg %p126
        $region46: #{_anchor_target_device.2} parent=43 // pred_check_branch
          %497 = sbr.rel (%p495) target = $region48
        $region47: #{_anchor_target_device.2} parent=43 // pred_region
          %p498 = scmp.lt.s32.totalorder %s22, 1
          %s499 = scalar_select %p498, %s22, 1
          %p500 = scmp.lt.s32.totalorder %s21, 0
          %s501 = scalar_select %p500, %s21, 0
          %s502 = sadd.s32 %s501, %s499
          %s503 = scalar_lea.vmem %s3, %s502
        $region48: #{_anchor_target_device.2} parent=43 // pred_fallthru
          _
      $region44: #{_anchor_target_device.2} parent=5 // pred_fallthru
        _
    $region6: #{_anchor_target_device.2} parent=1 // loop_footer
      %s14 = sadd.s32 1, %s10
    $region7: #{_anchor_target_device.2} parent=1 // loop_footer_branch
      %9 = sbr.rel target = $region3
    $region8: #{_anchor_target_device.2} parent=1 // loop_exit
      _
    %504 = vsyncpa [#allocation3], 1
    %s505 = scalar_lea.sflag [#allocation3], 1
    %506 = vsyncpa %s505, 1

</llo_original>
